<compile_context>
chip_gen: v7x
topology: tpu7x:2x2x1
jax: 0.10.0
libtpu: 0.0.40
codegen_flags: <defaults>
</compile_context>

<pallas_src>
import functools

import jax
import jax.numpy as jnp
from jax.experimental import pallas as pl
from jax.experimental.pallas import tpu as pltpu

_LANE = 128
_MIB = 1024 * 1024


def _round_up(v, m):
    return -(-v // m) * m


def _hw_vmem_capacity():
    """Physical VMEM per TensorCore (bytes); conservative fallback = 64 MiB (v7x)."""
    try:
        cap = int(pltpu.get_tpu_info().vmem_capacity_bytes)
        if cap > 0:
            return cap
    except Exception:
        pass
    return 64 * _MIB


def _choose_tile(base, cap, max_overhead=1.125):
    """Largest power-of-two multiple of 128 <= cap whose zero-padding overhead
    over `base` (a multiple of 128) stays below max_overhead.  Padding N up
    beats collapsing to 128-wide K tiles (accumulator RMW + per-step cost)."""
    t = cap
    while t > _LANE:
        if _round_up(base, t) <= max_overhead * base:
            return t
        t //= 2
    return _LANE


def _pad2(w, rows, cols):
    return jnp.zeros((rows, cols), w.dtype).at[: w.shape[0], : w.shape[1]].set(w)


# ----------------------------------------------------------------------------
# Pallas kernels
# ----------------------------------------------------------------------------
def _gin_conv_kernel(pre_mm, eps_ref, a_ref, zk_ref, zi_ref, *rest):
    """One GINConv layer: K-tiled dense aggregation + fused epilogue.

    grid = (N_pad//TM, N_pad//TK): axis 0 = parallel row tiles, axis 1 = the
    reduction over source-node tiles of the adjacency.

    pre_mm=False (cin_pad <= hid_pad):
        acc = A @ x ;  out = relu(((1+eps)*x + acc) @ W0 + b0) @ W1 + b1
    pre_mm=True  (hid_pad <  cin_pad): wrapper precomputes z = x @ W0, so the
    O(N^2) aggregation runs in the narrower hidden space:
        acc = A @ z ;  out = relu((1+eps)*z + acc + b0) @ W1 + b1
    """
    if pre_mm:
        b0_ref, w1_ref, b1_ref, o_ref, acc_ref = rest
        w0_ref = None
    else:
        w0_ref, b0_ref, w1_ref, b1_ref, o_ref, acc_ref = rest

    k = pl.program_id(1)

    @pl.when(k == 0)
    def _():
        acc_ref[...] = jnp.zeros_like(acc_ref)

    # Neighborhood sum: A[i_tile, k_tile] @ z[k_tile].  A is streamed from HBM
    # as int8 edge counts (halves the dominant N^2 HBM term); the int8->bf16
    # upcast is VPU work hidden under the A-tile DMA on this mem-bound sweep.
    a_tile = a_ref[...].astype(jnp.float32).astype(jnp.bfloat16)
    acc_ref[...] += jnp.dot(a_tile, zk_ref[...],
                            preferred_element_type=jnp.float32)

    @pl.when(k == pl.num_programs(1) - 1)
    def _():
        eps = eps_ref[0, 0]
        h = acc_ref[...] + (1.0 + eps) * zi_ref[...].astype(jnp.float32)
        if not pre_mm:
            # MLP layer 0 (Linear); for pre_mm it was folded into z = x @ W0.
            h = jnp.dot(h.astype(jnp.bfloat16), w0_ref[...],
                        preferred_element_type=jnp.float32)
        h = jnp.maximum(h + b0_ref[...], 0.0)           # + b0, ReLU
        # MLP layer 1 (Linear); dropout p=0 / eval and batch_norm=False -> no-ops
        out = jnp.dot(h.astype(jnp.bfloat16), w1_ref[...],
                      preferred_element_type=jnp.float32) + b1_ref[...]
        o_ref[...] = out.astype(o_ref.dtype)


def _final_linear_kernel(num_segs, *refs):
    """y = sum_s x_s @ W_s + b  (== concat(xs, -1) @ W + b) for one row tile."""
    b_ref = refs[2 * num_segs]
    o_ref = refs[2 * num_segs + 1]
    acc = jnp.dot(refs[0][...], refs[1][...], preferred_element_type=jnp.float32)
    for s in range(1, num_segs):
        acc = acc + jnp.dot(refs[2 * s][...], refs[2 * s + 1][...],
                            preferred_element_type=jnp.float32)
    o_ref[...] = (acc + b_ref[...]).astype(o_ref.dtype)


# ----------------------------------------------------------------------------
# pallas_call wrappers
# ----------------------------------------------------------------------------
def gin_conv_pallas(a, x, eps, w0, b0, w1, b1, *, tm, tk, vmem_limit):
    n_pad = a.shape[0]
    cin = x.shape[1]
    hid = w0.shape[1]
    cout = w1.shape[1]

    # Aggregate in the narrower of the (padded) input / hidden spaces: the
    # O(N^2) term's FLOPs and z-stream bytes scale with that lane width.
    pre_mm = hid < cin
    if pre_mm:
        z = jnp.dot(x, w0, preferred_element_type=jnp.float32).astype(jnp.bfloat16)
        width = hid
    else:
        z = x
        width = cin

    grid = (n_pad // tm, n_pad // tk)

    in_specs = [
        pl.BlockSpec(memory_space=pltpu.MemorySpace.SMEM),   # eps (scalar)
        pl.BlockSpec((tm, tk), lambda i, k: (i, k)),          # A tile (int8)
        pl.BlockSpec((tk, width), lambda i, k: (k, 0)),       # z rows (aggregation)
        pl.BlockSpec((tm, width), lambda i, k: (i, 0)),       # z rows (self term)
    ]
    operands = [eps, a, z, z]
    if not pre_mm:
        in_specs.append(pl.BlockSpec((cin, hid), lambda i, k: (0, 0)))  # w0
        operands.append(w0)
    in_specs += [
        pl.BlockSpec((1, hid), lambda i, k: (0, 0)),           # b0
        pl.BlockSpec((hid, cout), lambda i, k: (0, 0)),        # w1
        pl.BlockSpec((1, cout), lambda i, k: (0, 0)),          # b1
    ]
    operands += [b0, w1, b1]

    flops = (2 * n_pad * n_pad * width
             + (0 if pre_mm else 2 * n_pad * cin * hid)
             + 2 * n_pad * hid * cout)
    cost = pl.CostEstimate(
        flops=flops,
        transcendentals=0,
        bytes_accessed=(n_pad * n_pad * a.dtype.itemsize      # int8 A dominates
                        + 2 * n_pad * width * 2               # z (agg + self), bf16
                        + n_pad * cout * 2                    # bf16 output
                        + (cin * hid + hid * cout) * 2
                        + (hid + cout) * 4),
    )

    return pl.pallas_call(
        functools.partial(_gin_conv_kernel, pre_mm),
        out_shape=jax.ShapeDtypeStruct((n_pad, cout), jnp.bfloat16),
        grid=grid,
        in_specs=in_specs,
        out_specs=pl.BlockSpec((tm, cout), lambda i, k: (i, 0)),
        scratch_shapes=[pltpu.VMEM((tm, width), jnp.float32)],
        compiler_params=pltpu.CompilerParams(
            dimension_semantics=("parallel", "arbitrary"),
            vmem_limit_bytes=vmem_limit),
        cost_estimate=cost,
    )(*operands)


def final_linear_pallas(x_segs, w_segs, b, *, tm, vmem_limit):
    n_pad = x_segs[0].shape[0]
    cout = w_segs[0].shape[1]
    num_segs = len(x_segs)

    in_specs = []
    operands = []
    for xseg, wseg in zip(x_segs, w_segs):
        in_specs.append(pl.BlockSpec((tm, xseg.shape[1]), lambda i: (i, 0)))
        in_specs.append(pl.BlockSpec(wseg.shape, lambda i: (0, 0)))
        operands += [xseg, wseg]
    in_specs.append(pl.BlockSpec((1, cout), lambda i: (0, 0)))
    operands.append(b)

    flops = sum(2 * n_pad * xs.shape[1] * cout for xs in x_segs)
    bytes_acc = (sum(xs.size * xs.dtype.itemsize for xs in x_segs)
                 + sum(ws.size * ws.dtype.itemsize for ws in w_segs)
                 + b.size * 4 + n_pad * cout * 4)

    return pl.pallas_call(
        functools.partial(_final_linear_kernel, num_segs),
        out_shape=jax.ShapeDtypeStruct((n_pad, cout), jnp.float32),
        grid=(n_pad // tm,),
        in_specs=in_specs,
        out_specs=pl.BlockSpec((tm, cout), lambda i: (i, 0)),
        compiler_params=pltpu.CompilerParams(
            dimension_semantics=("parallel",),
            vmem_limit_bytes=vmem_limit),
        cost_estimate=pl.CostEstimate(flops=flops, transcendentals=0,
                                      bytes_accessed=bytes_acc),
    )(*operands)


# ----------------------------------------------------------------------------
# GIN module (glue in plain JAX, hot path in Pallas)
# ----------------------------------------------------------------------------
def init_gin_params(key, in_channels, out_channels, num_layers,
                    cat=True, lin=True):
    """Mimics torch.nn.Linear.reset_parameters (U(-bound, +bound), bound =
    1/sqrt(fan_in)); GINConv eps initialised to 0.  Weights are stored
    pre-transposed as [fan_in, fan_out], zero-padded to lane-dense
    (multiple-of-128) widths and cast to bf16 for the MXU; biases stay f32."""
    in_pad = _round_up(in_channels, _LANE)
    out_pad = _round_up(out_channels, _LANE)

    def make_linear(k, fi, fo, fi_pad, fo_pad):
        kw, kb = jax.random.split(k)
        bound = 1.0 / float(fi) ** 0.5
        w = jax.random.uniform(kw, (fi, fo), jnp.float32, -bound, bound)
        bvec = jax.random.uniform(kb, (1, fo), jnp.float32, -bound, bound)
        return (_pad2(w, fi_pad, fo_pad).astype(jnp.bfloat16),
                _pad2(bvec, 1, fo_pad))

    params = {"convs": []}
    c_in, c_in_pad = in_channels, in_pad
    for _ in range(num_layers):
        key, k0, k1 = jax.random.split(key, 3)
        w0, b0 = make_linear(k0, c_in, out_channels, c_in_pad, out_pad)
        w1, b1 = make_linear(k1, out_channels, out_channels, out_pad, out_pad)
        params["convs"].append({"eps": jnp.zeros((1, 1), jnp.float32),
                                "w0": w0, "b0": b0, "w1": w1, "b1": b1})
        c_in, c_in_pad = out_channels, out_pad

    if lin:
        fan_in = in_channels + num_layers * out_channels if cat else out_channels
        key, kw, kb = jax.random.split(key, 3)
        bound = 1.0 / float(fan_in) ** 0.5
        w = jax.random.uniform(kw, (fan_in, out_channels), jnp.float32, -bound, bound)
        bvec = jax.random.uniform(kb, (1, out_channels), jnp.float32, -bound, bound)
        # Split W row-wise into per-segment blocks matching [x, conv1, ...]
        # (padded widths), so concat(xs) @ W == sum_s xs[s] @ W_s.
        if cat:
            seg_rows = [in_channels] + [out_channels] * num_layers
            seg_rows_pad = [in_pad] + [out_pad] * num_layers
        else:
            seg_rows, seg_rows_pad = [out_channels], [out_pad]
        segs, off = [], 0
        for rows, rows_pad in zip(seg_rows, seg_rows_pad):
            segs.append(_pad2(w[off:off + rows], rows_pad, out_pad).astype(jnp.bfloat16))
            off += rows
        params["final_w_segs"] = segs
        params["final_b"] = _pad2(bvec, 1, out_pad)
    return params


@functools.partial(jax.jit, static_argnames=("out_channels", "cat", "lin"))
def gin_forward(params, x, edge_index, *, out_channels, cat=True, lin=True):
    n, in_c = x.shape
    in_pad = _round_up(in_c, _LANE)
    out_pad = _round_up(out_channels, _LANE)
    base = _round_up(n, _LANE)

    # ---- generation-aware static tiling (resolved at trace time) -----------
    vmem_cap = _hw_vmem_capacity()
    vmem_limit = min(64 * _MIB, max(32 * _MIB, vmem_cap // 2))
    if vmem_cap >= 96 * _MIB:          # v5e / v6e: 128 MiB physical VMEM
        bm_cap, bk_cap = 1024, 4096
    else:                              # v7x: 64 MiB physical VMEM
        bm_cap, bk_cap = 512, 2048
    tm = _choose_tile(base, bm_cap)
    tk = _choose_tile(base, bk_cap)

    wmax = max(in_pad, out_pad)        # widest feature dim seen by any layer

    def _est_vmem(tm_, tk_):           # conservative per-conv VMEM estimate
        return (3 * tm_ * tk_                         # int8 A x2 buf + bf16 cast tmp
                + 2 * tk_ * wmax * 2 + 2 * tm_ * wmax * 2
                + tm_ * wmax * 4 + 2 * tm_ * out_pad * 2
                + 4 * (wmax * out_pad + out_pad * out_pad))

    while _est_vmem(tm, tk) > int(0.75 * vmem_limit) and (tk > _LANE or tm > _LANE):
        if tk > _LANE:
            tk //= 2
        else:
            tm //= 2

    n_pad = _round_up(n, max(tm, tk))  # pad N up to a tile multiple (inert zeros)

    # ---- dense adjacency, built once per forward directly in int8 ----------
    # A[dst, src] += 1 (PyG flow source->target, sum aggregation).  int8 halves
    # the dominant N^2 HBM stream vs bf16 and avoids the old f32-scatter+cast
    # round trip.  Exact for edge multiplicities <= 127.
    src, dst = edge_index[0], edge_index[1]
    a = jnp.zeros((n_pad, n_pad), jnp.int8).at[dst, src].add(1)

    x0 = jnp.zeros((n_pad, in_pad), jnp.bfloat16).at[:n, :in_c].set(
        x.astype(jnp.bfloat16))
    xs = [x0]
    for layer in params["convs"]:
        xs.append(gin_conv_pallas(a, xs[-1], layer["eps"],
                                  layer["w0"], layer["b0"],
                                  layer["w1"], layer["b1"],
                                  tm=tm, tk=tk, vmem_limit=vmem_limit))

    if lin:
        segs = xs if cat else xs[-1:]
        out = final_linear_pallas(segs, params["final_w_segs"], params["final_b"],
                                  tm=tm, vmem_limit=vmem_limit)
        return out[:n, :out_channels]
    if cat:
        widths = [in_c] + [out_channels] * len(params["convs"])
        return jnp.concatenate(
            [h[:n, :w].astype(jnp.float32) for h, w in zip(xs, widths)], axis=-1)
    return xs[-1][:n, :out_channels].astype(jnp.float32)


# ----------------------------------------------------------------------------
# Pure-JAX reference (f32) for correctness checking
# ----------------------------------------------------------------------------
def gin_reference(params, x, edge_index, in_channels, out_channels, num_layers,
                  cat=True, lin=True):
    n = x.shape[0]
    src, dst = edge_index[0], edge_index[1]
    a = jnp.zeros((n, n), jnp.float32).at[dst, src].add(1.0)
    xs = [x]
    c_in = in_channels
    for layer in params["convs"]:
        w0 = layer["w0"].astype(jnp.float32)[:c_in, :out_channels]
        b0 = layer["b0"][0, :out_channels]
        w1 = layer["w1"].astype(jnp.float32)[:out_channels, :out_channels]
        b1 = layer["b1"][0, :out_channels]
        eps = layer["eps"][0, 0]
        h = (1.0 + eps) * xs[-1] + a @ xs[-1]
        h = jnp.maximum(h @ w0 + b0, 0.0)
        xs.append(h @ w1 + b1)
        c_in = out_channels
    xcat = jnp.concatenate(xs, axis=-1) if cat else xs[-1]
    if lin:
        seg_rows = ([in_channels] + [out_channels] * num_layers) if cat else [out_channels]
        ws = [seg.astype(jnp.float32)[:r, :out_channels]
              for seg, r in zip(params["final_w_segs"], seg_rows)]
        w = jnp.concatenate(ws, axis=0)
        b = params["final_b"][0, :out_channels]
        return xcat @ w + b
    return xcat


if __name__ == "__main__":
    def run_case(seed, n, e, in_c, out_c, layers):
        key = jax.random.PRNGKey(seed)
        key, kx, ke = jax.random.split(key, 3)
        x = jax.random.normal(kx, (n, in_c), jnp.float32)
        edge_index = jax.random.randint(ke, (2, e), 0, n, jnp.int32)
        params = init_gin_params(key, in_c, out_c, layers, cat=True, lin=True)

        out = gin_forward(params, x, edge_index, out_channels=out_c, cat=True, lin=True)
        out = jax.block_until_ready(out)
        assert out.shape == (n, out_c), out.shape
        assert bool(jnp.all(jnp.isfinite(out)))

        ref = gin_reference(params, x, edge_index, in_c, out_c, layers,
                            cat=True, lin=True)
        err = float(jnp.max(jnp.abs(out - ref)))
        scale = float(jnp.max(jnp.abs(ref))) + 1e-6
        # bf16 activation chain vs f32 reference -> loose tolerance.
        assert err / scale < 0.08, (err, scale)
        return out

    # standard path: cin_pad <= hid_pad (aggregate in input space)
    run_case(0, 16, 32, 4, 32, 2)
    # pre-transformed path: hid_pad < cin_pad (aggregate as A @ (x @ W0))
    run_case(1, 16, 24, 160, 32, 1)
    print("KERNEL_OK")
</pallas_src>

<mosaic_0001>
module attributes {stable_mosaic.version = 11 : i64} {
  func.func @_final_linear_kernel(%arg0: i32, %arg1: memref<128x128xbf16, #tpu.memory_space<vmem>>, %arg2: memref<128x128xbf16, #tpu.memory_space<vmem>>, %arg3: memref<128x128xbf16, #tpu.memory_space<vmem>>, %arg4: memref<128x128xbf16, #tpu.memory_space<vmem>>, %arg5: memref<128x128xbf16, #tpu.memory_space<vmem>>, %arg6: memref<128x128xbf16, #tpu.memory_space<vmem>>, %arg7: memref<1x128xf32, #tpu.memory_space<vmem>>, %arg8: memref<128x128xf32, #tpu.memory_space<vmem>>) attributes {dimension_semantics = [#tpu.dimension_semantics<parallel>], iteration_bounds = array<i64: 1>, scalar_prefetch = 0 : i64, scratch_operands = 0 : i64, tpu.core_type = #tpu.core_type<tc>, window_params = [{transform_indices = @transform_0, window_bounds = array<i64: 128, 128>}, {pipeline_mode = #tpu.pipeline_mode<synchronous>, transform_indices = @transform_1, window_bounds = array<i64: 128, 128>}, {transform_indices = @transform_2, window_bounds = array<i64: 128, 128>}, {pipeline_mode = #tpu.pipeline_mode<synchronous>, transform_indices = @transform_3, window_bounds = array<i64: 128, 128>}, {transform_indices = @transform_4, window_bounds = array<i64: 128, 128>}, {pipeline_mode = #tpu.pipeline_mode<synchronous>, transform_indices = @transform_5, window_bounds = array<i64: 128, 128>}, {pipeline_mode = #tpu.pipeline_mode<synchronous>, transform_indices = @transform_6, window_bounds = array<i64: 1, 128>}, {transform_indices = @transform_7, window_bounds = array<i64: 128, 128>}]} {
    %c0 = arith.constant 0 : index
    %c0_0 = arith.constant 0 : index
    %0 = vector.load %arg1[%c0, %c0_0] : memref<128x128xbf16, #tpu.memory_space<vmem>>, vector<128x128xbf16>
    %c0_1 = arith.constant 0 : index
    %c0_2 = arith.constant 0 : index
    %1 = vector.load %arg2[%c0_1, %c0_2] : memref<128x128xbf16, #tpu.memory_space<vmem>>, vector<128x128xbf16>
    %cst = arith.constant dense<0.000000e+00> : vector<128x128xf32>
    %2 = tpu.matmul %0, %1, %cst {dimension_numbers = #tpu.dot_dimension_numbers<[1], [0], [0], [1], [0, 0, 1, 1], [], []>} : vector<128x128xbf16>, vector<128x128xbf16>, vector<128x128xf32> -> vector<128x128xf32>
    %c0_3 = arith.constant 0 : index
    %c0_4 = arith.constant 0 : index
    %3 = vector.load %arg3[%c0_3, %c0_4] : memref<128x128xbf16, #tpu.memory_space<vmem>>, vector<128x128xbf16>
    %c0_5 = arith.constant 0 : index
    %c0_6 = arith.constant 0 : index
    %4 = vector.load %arg4[%c0_5, %c0_6] : memref<128x128xbf16, #tpu.memory_space<vmem>>, vector<128x128xbf16>
    %cst_7 = arith.constant dense<0.000000e+00> : vector<128x128xf32>
    %5 = tpu.matmul %3, %4, %cst_7 {dimension_numbers = #tpu.dot_dimension_numbers<[1], [0], [0], [1], [0, 0, 1, 1], [], []>} : vector<128x128xbf16>, vector<128x128xbf16>, vector<128x128xf32> -> vector<128x128xf32>
    %6 = arith.addf %2, %5 : vector<128x128xf32>
    %c0_8 = arith.constant 0 : index
    %c0_9 = arith.constant 0 : index
    %7 = vector.load %arg5[%c0_8, %c0_9] : memref<128x128xbf16, #tpu.memory_space<vmem>>, vector<128x128xbf16>
    %c0_10 = arith.constant 0 : index
    %c0_11 = arith.constant 0 : index
    %8 = vector.load %arg6[%c0_10, %c0_11] : memref<128x128xbf16, #tpu.memory_space<vmem>>, vector<128x128xbf16>
    %cst_12 = arith.constant dense<0.000000e+00> : vector<128x128xf32>
    %9 = tpu.matmul %7, %8, %cst_12 {dimension_numbers = #tpu.dot_dimension_numbers<[1], [0], [0], [1], [0, 0, 1, 1], [], []>} : vector<128x128xbf16>, vector<128x128xbf16>, vector<128x128xf32> -> vector<128x128xf32>
    %10 = arith.addf %6, %9 : vector<128x128xf32>
    %c0_13 = arith.constant 0 : index
    %c0_14 = arith.constant 0 : index
    %11 = vector.load %arg7[%c0_13, %c0_14] : memref<1x128xf32, #tpu.memory_space<vmem>>, vector<1x128xf32>
    %12 = vector.broadcast %11 : vector<1x128xf32> to vector<128x128xf32>
    %13 = arith.addf %10, %12 : vector<128x128xf32>
    %c0_15 = arith.constant 0 : index
    %c0_16 = arith.constant 0 : index
    %14 = vector.load %arg8[%c0_15, %c0_16] : memref<128x128xf32, #tpu.memory_space<vmem>>, vector<128x128xf32>
    tpu.vector_store %arg8[%c0_15, %c0_16], %13 {strides = array<i32>} : memref<128x128xf32, #tpu.memory_space<vmem>>, vector<128x128xf32>,
    return
  }
  func.func @transform_0(%arg0: i32) -> (i32, i32) {
    %c0_i32 = arith.constant 0 : i32
    %c0_i32_0 = arith.constant 0 : i32
    return %arg0, %c0_i32 : i32, i32
  }
  func.func @transform_1(%arg0: i32) -> (i32, i32) {
    %c0_i32 = arith.constant 0 : i32
    %c0_i32_0 = arith.constant 0 : i32
    %c0_i32_1 = arith.constant 0 : i32
    return %c0_i32, %c0_i32_0 : i32, i32
  }
  func.func @transform_2(%arg0: i32) -> (i32, i32) {
    %c0_i32 = arith.constant 0 : i32
    %c0_i32_0 = arith.constant 0 : i32
    return %arg0, %c0_i32 : i32, i32
  }
  func.func @transform_3(%arg0: i32) -> (i32, i32) {
    %c0_i32 = arith.constant 0 : i32
    %c0_i32_0 = arith.constant 0 : i32
    %c0_i32_1 = arith.constant 0 : i32
    return %c0_i32, %c0_i32_0 : i32, i32
  }
  func.func @transform_4(%arg0: i32) -> (i32, i32) {
    %c0_i32 = arith.constant 0 : i32
    %c0_i32_0 = arith.constant 0 : i32
    return %arg0, %c0_i32 : i32, i32
  }
  func.func @transform_5(%arg0: i32) -> (i32, i32) {
    %c0_i32 = arith.constant 0 : i32
    %c0_i32_0 = arith.constant 0 : i32
    %c0_i32_1 = arith.constant 0 : i32
    return %c0_i32, %c0_i32_0 : i32, i32
  }
  func.func @transform_6(%arg0: i32) -> (i32, i32) {
    %c0_i32 = arith.constant 0 : i32
    %c0_i32_0 = arith.constant 0 : i32
    %c0_i32_1 = arith.constant 0 : i32
    return %c0_i32, %c0_i32_0 : i32, i32
  }
  func.func @transform_7(%arg0: i32) -> (i32, i32) {
    %c0_i32 = arith.constant 0 : i32
    %c0_i32_0 = arith.constant 0 : i32
    return %arg0, %c0_i32 : i32, i32
  }
}

module attributes {stable_mosaic.version = 11 : i64} {
  func.func @_gin_conv_kernel(%arg0: i32, %arg1: i32, %arg2: memref<1x1xf32, #tpu.memory_space<smem>>, %arg3: memref<128x128xi8, #tpu.memory_space<vmem>>, %arg4: memref<128x128xbf16, #tpu.memory_space<vmem>>, %arg5: memref<128x128xbf16, #tpu.memory_space<vmem>>, %arg6: memref<128x128xbf16, #tpu.memory_space<vmem>>, %arg7: memref<1x128xf32, #tpu.memory_space<vmem>>, %arg8: memref<128x128xbf16, #tpu.memory_space<vmem>>, %arg9: memref<1x128xf32, #tpu.memory_space<vmem>>, %arg10: memref<128x128xbf16, #tpu.memory_space<vmem>>, %arg11: memref<128x128xf32, #tpu.memory_space<vmem>>) attributes {dimension_semantics = [#tpu.dimension_semantics<parallel>, #tpu.dimension_semantics<arbitrary>], iteration_bounds = array<i64: 1, 1>, scalar_prefetch = 0 : i64, scratch_operands = 1 : i64, tpu.core_type = #tpu.core_type<tc>, window_params = [{transform_indices = @transform_0, window_bounds = array<i64: 1, 1>}, {transform_indices = @transform_1, window_bounds = array<i64: 128, 128>}, {transform_indices = @transform_2, window_bounds = array<i64: 128, 128>}, {transform_indices = @transform_3, window_bounds = array<i64: 128, 128>}, {pipeline_mode = #tpu.pipeline_mode<synchronous>, transform_indices = @transform_4, window_bounds = array<i64: 128, 128>}, {pipeline_mode = #tpu.pipeline_mode<synchronous>, transform_indices = @transform_5, window_bounds = array<i64: 1, 128>}, {pipeline_mode = #tpu.pipeline_mode<synchronous>, transform_indices = @transform_6, window_bounds = array<i64: 128, 128>}, {pipeline_mode = #tpu.pipeline_mode<synchronous>, transform_indices = @transform_7, window_bounds = array<i64: 1, 128>}, {transform_indices = @transform_8, window_bounds = array<i64: 128, 128>}]} {
    %c0_i32 = arith.constant 0 : i32
    %0 = arith.cmpi eq, %arg1, %c0_i32 : i32
    %1 = arith.extui %0 : i1 to i32
    %c0_i32_0 = arith.constant 0 : i32
    %2 = arith.cmpi ne, %1, %c0_i32_0 : i32
    scf.if %2 {
      %cst_10 = arith.constant 0.000000e+00 : f32
      %14 = vector.broadcast %cst_10 : f32 to vector<128x128xf32>
      %c0_11 = arith.constant 0 : index
      %c0_12 = arith.constant 0 : index
      %15 = vector.load %arg11[%c0_11, %c0_12] : memref<128x128xf32, #tpu.memory_space<vmem>>, vector<128x128xf32>
      tpu.vector_store %arg11[%c0_11, %c0_12], %14 {strides = array<i32>} : memref<128x128xf32, #tpu.memory_space<vmem>>, vector<128x128xf32>,
    } else {
    }
    %c0 = arith.constant 0 : index
    %c0_1 = arith.constant 0 : index
    %3 = vector.load %arg3[%c0, %c0_1] : memref<128x128xi8, #tpu.memory_space<vmem>>, vector<128x128xi8>
    %4 = arith.sitofp %3 : vector<128x128xi8> to vector<128x128xf32>
    %5 = arith.truncf %4 : vector<128x128xf32> to vector<128x128xbf16>
    %c0_2 = arith.constant 0 : index
    %c0_3 = arith.constant 0 : index
    %6 = vector.load %arg11[%c0_2, %c0_3] : memref<128x128xf32, #tpu.memory_space<vmem>>, vector<128x128xf32>
    %c0_4 = arith.constant 0 : index
    %c0_5 = arith.constant 0 : index
    %7 = vector.load %arg4[%c0_4, %c0_5] : memref<128x128xbf16, #tpu.memory_space<vmem>>, vector<128x128xbf16>
    %cst = arith.constant dense<0.000000e+00> : vector<128x128xf32>
    %8 = tpu.matmul %5, %7, %cst {dimension_numbers = #tpu.dot_dimension_numbers<[1], [0], [0], [1], [0, 0, 1, 1], [], []>} : vector<128x128xbf16>, vector<128x128xbf16>, vector<128x128xf32> -> vector<128x128xf32>
    %9 = arith.addf %6, %8 : vector<128x128xf32>
    %c0_6 = arith.constant 0 : index
    %c0_7 = arith.constant 0 : index
    %10 = vector.load %arg11[%c0_6, %c0_7] : memref<128x128xf32, #tpu.memory_space<vmem>>, vector<128x128xf32>
    tpu.vector_store %arg11[%c0_6, %c0_7], %9 {strides = array<i32>} : memref<128x128xf32, #tpu.memory_space<vmem>>, vector<128x128xf32>,
    %c0_i32_8 = arith.constant 0 : i32
    %11 = arith.cmpi eq, %arg1, %c0_i32_8 : i32
    %12 = arith.extui %11 : i1 to i32
    %c0_i32_9 = arith.constant 0 : i32
    %13 = arith.cmpi ne, %12, %c0_i32_9 : i32
    scf.if %13 {
      %c0_10 = arith.constant 0 : index
      %c0_11 = arith.constant 0 : index
      %14 = memref.load %arg2[%c0_10, %c0_11] : memref<1x1xf32, #tpu.memory_space<smem>>
      %c0_12 = arith.constant 0 : index
      %c0_13 = arith.constant 0 : index
      %15 = vector.load %arg11[%c0_12, %c0_13] : memref<128x128xf32, #tpu.memory_space<vmem>>, vector<128x128xf32>
      %cst_14 = arith.constant 1.000000e+00 : f32
      %16 = arith.addf %cst_14, %14 : f32
      %c0_15 = arith.constant 0 : index
      %c0_16 = arith.constant 0 : index
      %17 = vector.load %arg5[%c0_15, %c0_16] : memref<128x128xbf16, #tpu.memory_space<vmem>>, vector<128x128xbf16>
      %18 = arith.extf %17 : vector<128x128xbf16> to vector<128x128xf32>
      %19 = vector.broadcast %16 : f32 to vector<128x128xf32>
      %20 = arith.mulf %19, %18 : vector<128x128xf32>
      %21 = arith.addf %15, %20 : vector<128x128xf32>
      %22 = arith.truncf %21 : vector<128x128xf32> to vector<128x128xbf16>
      %c0_17 = arith.constant 0 : index
      %c0_18 = arith.constant 0 : index
      %23 = vector.load %arg6[%c0_17, %c0_18] : memref<128x128xbf16, #tpu.memory_space<vmem>>, vector<128x128xbf16>
      %cst_19 = arith.constant dense<0.000000e+00> : vector<128x128xf32>
      %24 = tpu.matmul %22, %23, %cst_19 {dimension_numbers = #tpu.dot_dimension_numbers<[1], [0], [0], [1], [0, 0, 1, 1], [], []>} : vector<128x128xbf16>, vector<128x128xbf16>, vector<128x128xf32> -> vector<128x128xf32>
      %c0_20 = arith.constant 0 : index
      %c0_21 = arith.constant 0 : index
      %25 = vector.load %arg7[%c0_20, %c0_21] : memref<1x128xf32, #tpu.memory_space<vmem>>, vector<1x128xf32>
      %26 = vector.broadcast %25 : vector<1x128xf32> to vector<128x128xf32>
      %27 = arith.addf %24, %26 : vector<128x128xf32>
      %cst_22 = arith.constant 0.000000e+00 : f32
      %28 = vector.broadcast %cst_22 : f32 to vector<128x128xf32>
      %29 = arith.maximumf %27, %28 : vector<128x128xf32>
      %30 = arith.truncf %29 : vector<128x128xf32> to vector<128x128xbf16>
      %c0_23 = arith.constant 0 : index
      %c0_24 = arith.constant 0 : index
      %31 = vector.load %arg8[%c0_23, %c0_24] : memref<128x128xbf16, #tpu.memory_space<vmem>>, vector<128x128xbf16>
      %cst_25 = arith.constant dense<0.000000e+00> : vector<128x128xf32>
      %32 = tpu.matmul %30, %31, %cst_25 {dimension_numbers = #tpu.dot_dimension_numbers<[1], [0], [0], [1], [0, 0, 1, 1], [], []>} : vector<128x128xbf16>, vector<128x128xbf16>, vector<128x128xf32> -> vector<128x128xf32>
      %c0_26 = arith.constant 0 : index
      %c0_27 = arith.constant 0 : index
      %33 = vector.load %arg9[%c0_26, %c0_27] : memref<1x128xf32, #tpu.memory_space<vmem>>, vector<1x128xf32>
      %34 = vector.broadcast %33 : vector<1x128xf32> to vector<128x128xf32>
      %35 = arith.addf %32, %34 : vector<128x128xf32>
      %36 = arith.truncf %35 : vector<128x128xf32> to vector<128x128xbf16>
      %c0_28 = arith.constant 0 : index
      %c0_29 = arith.constant 0 : index
      %37 = vector.load %arg10[%c0_28, %c0_29] : memref<128x128xbf16, #tpu.memory_space<vmem>>, vector<128x128xbf16>
      tpu.vector_store %arg10[%c0_28, %c0_29], %36 {strides = array<i32>} : memref<128x128xbf16, #tpu.memory_space<vmem>>, vector<128x128xbf16>,
    } else {
    }
    return
  }
  func.func @transform_0(%arg0: i32, %arg1: i32) -> (i32, i32) {
    %c0_i32 = arith.constant 0 : i32
    %c0_i32_0 = arith.constant 0 : i32
    %c0_i32_1 = arith.constant 0 : i32
    return %c0_i32, %c0_i32_0 : i32, i32
  }
  func.func @transform_1(%arg0: i32, %arg1: i32) -> (i32, i32) {
    %c0_i32 = arith.constant 0 : i32
    return %arg0, %arg1 : i32, i32
  }
  func.func @transform_2(%arg0: i32, %arg1: i32) -> (i32, i32) {
    %c0_i32 = arith.constant 0 : i32
    %c0_i32_0 = arith.constant 0 : i32
    return %arg1, %c0_i32 : i32, i32
  }
  func.func @transform_3(%arg0: i32, %arg1: i32) -> (i32, i32) {
    %c0_i32 = arith.constant 0 : i32
    %c0_i32_0 = arith.constant 0 : i32
    return %arg0, %c0_i32 : i32, i32
  }
  func.func @transform_4(%arg0: i32, %arg1: i32) -> (i32, i32) {
    %c0_i32 = arith.constant 0 : i32
    %c0_i32_0 = arith.constant 0 : i32
    %c0_i32_1 = arith.constant 0 : i32
    return %c0_i32, %c0_i32_0 : i32, i32
  }
  func.func @transform_5(%arg0: i32, %arg1: i32) -> (i32, i32) {
    %c0_i32 = arith.constant 0 : i32
    %c0_i32_0 = arith.constant 0 : i32
    %c0_i32_1 = arith.constant 0 : i32
    return %c0_i32, %c0_i32_0 : i32, i32
  }
  func.func @transform_6(%arg0: i32, %arg1: i32) -> (i32, i32) {
    %c0_i32 = arith.constant 0 : i32
    %c0_i32_0 = arith.constant 0 : i32
    %c0_i32_1 = arith.constant 0 : i32
    return %c0_i32, %c0_i32_0 : i32, i32
  }
  func.func @transform_7(%arg0: i32, %arg1: i32) -> (i32, i32) {
    %c0_i32 = arith.constant 0 : i32
    %c0_i32_0 = arith.constant 0 : i32
    %c0_i32_1 = arith.constant 0 : i32
    return %c0_i32, %c0_i32_0 : i32, i32
  }
  func.func @transform_8(%arg0: i32, %arg1: i32) -> (i32, i32) {
    %c0_i32 = arith.constant 0 : i32
    %c0_i32_0 = arith.constant 0 : i32
    return %arg0, %c0_i32 : i32, i32
  }
}

</mosaic_0001>

<llo_original>
// kernel: gin_forward.5
$region0: #{gin_forward.5}
  #allocation0 [shape = 'u32[]', space=smem, size = 0x4, offset = 0x4, fixed_abs, tag = 'smem constant byte address 0x4 - core index']
  #allocation1 [shape = 'u32[144,128]{1,0:T(1,128)}', space=vmem, size = 0x12000, scoped, tag = 'internal scratch']
  %s0 = inlined_call_operand.vmem [shape: bf16[128,128], index: 0, kind: input, shape index: {}]
  %s1 = inlined_call_operand.vmem [shape: bf16[128,128], index: 1, kind: input, shape index: {}]
  %s2 = inlined_call_operand.vmem [shape: bf16[128,128], index: 2, kind: input, shape index: {}]
  %s3 = inlined_call_operand.vmem [shape: bf16[128,128], index: 3, kind: input, shape index: {}]
  %s4 = inlined_call_operand.vmem [shape: bf16[128,128], index: 4, kind: input, shape index: {}]
  %s5 = inlined_call_operand.vmem [shape: bf16[128,128], index: 5, kind: input, shape index: {}]
  %s6 = inlined_call_operand.vmem [shape: f32[1,128], index: 6, kind: input, shape index: {}]
  %s7 = inlined_call_operand.vmem [shape: f32[128,128], index: 7, kind: output, shape index: {}]
  %s8 = sld [smem:[#allocation0]]
  $region38: #{gin_forward.5} parent=0
    _
  %s10 = ssub.s32 1, %s8
  %s11 = scalar_select 0, %s10, %s8
  // Predicated region
  $region2: #{gin_forward.5} parent=0 // pred_check
    _
  $region3: #{gin_forward.5} parent=0 // pred_check_branch
    %13 = sbr.rel (0) target = $region5
  $region4: #{gin_forward.5} parent=0 // pred_region
    _
  $region5: #{gin_forward.5} parent=0 // pred_fallthru
    _
  // Predicated region
  $region6: #{gin_forward.5} parent=0 // pred_check
    _
  $region7: #{gin_forward.5} parent=0 // pred_check_branch
    %15 = sbr.rel (0) target = $region9
  $region8: #{gin_forward.5} parent=0 // pred_region
    _
  $region9: #{gin_forward.5} parent=0 // pred_fallthru
    _
  // Predicated region
  $region10: #{gin_forward.5} parent=0 // pred_check
    _
  $region11: #{gin_forward.5} parent=0 // pred_check_branch
    %17 = sbr.rel (0) target = $region13
  $region12: #{gin_forward.5} parent=0 // pred_region
    _
  $region13: #{gin_forward.5} parent=0 // pred_fallthru
    _
  // Predicated region
  $region14: #{gin_forward.5} parent=0 // pred_check
    _
  $region15: #{gin_forward.5} parent=0 // pred_check_branch
    %19 = sbr.rel (0) target = $region17
  $region16: #{gin_forward.5} parent=0 // pred_region
    _
  $region17: #{gin_forward.5} parent=0 // pred_fallthru
    _
  // Predicated region
  $region18: #{gin_forward.5} parent=0 // pred_check
    _
  $region19: #{gin_forward.5} parent=0 // pred_check_branch
    %21 = sbr.rel (0) target = $region21
  $region20: #{gin_forward.5} parent=0 // pred_region
    _
  $region21: #{gin_forward.5} parent=0 // pred_fallthru
    _
  // Predicated region
  $region22: #{gin_forward.5} parent=0 // pred_check
    _
  $region23: #{gin_forward.5} parent=0 // pred_check_branch
    %23 = sbr.rel (0) target = $region25
  $region24: #{gin_forward.5} parent=0 // pred_region
    _
  $region25: #{gin_forward.5} parent=0 // pred_fallthru
    _
  // Predicated region
  $region26: #{gin_forward.5} parent=0 // pred_check
    _
  $region27: #{gin_forward.5} parent=0 // pred_check_branch
    %25 = sbr.rel (0) target = $region29
  $region28: #{gin_forward.5} parent=0 // pred_region
    _
  $region29: #{gin_forward.5} parent=0 // pred_fallthru
    _
  %v27 = vld [vmem:[%s0] sm:$0xf]
  %v28 = vld [vmem:[%s0 + $0x4] sm:$0xf]
  %v29 = vld [vmem:[%s0 + $0x8] sm:$0xf]
  %v30 = vld [vmem:[%s0 + $0xc] sm:$0xf]
  %v31 = vld [vmem:[%s0 + $0x10] sm:$0xf]
  %v32 = vld [vmem:[%s0 + $0x14] sm:$0xf]
  %v33 = vld [vmem:[%s0 + $0x18] sm:$0xf]
  %v34 = vld [vmem:[%s0 + $0x1c] sm:$0xf]
  %v35 = vld [vmem:[%s0 + $0x20] sm:$0xf]
  %v36 = vld [vmem:[%s0 + $0x24] sm:$0xf]
  %v37 = vld [vmem:[%s0 + $0x28] sm:$0xf]
  %v38 = vld [vmem:[%s0 + $0x2c] sm:$0xf]
  %v39 = vld [vmem:[%s0 + $0x30] sm:$0xf]
  %v40 = vld [vmem:[%s0 + $0x34] sm:$0xf]
  %v41 = vld [vmem:[%s0 + $0x38] sm:$0xf]
  %v42 = vld [vmem:[%s0 + $0x3c] sm:$0xf]
  %v43 = vld [vmem:[%s1] sm:$0xf]
  %v44 = vld [vmem:[%s1 + $0x4] sm:$0xf]
  %v45 = vld [vmem:[%s1 + $0x8] sm:$0xf]
  %v46 = vld [vmem:[%s1 + $0xc] sm:$0xf]
  %v47 = vld [vmem:[%s1 + $0x10] sm:$0xf]
  %v48 = vld [vmem:[%s1 + $0x14] sm:$0xf]
  %v49 = vld [vmem:[%s1 + $0x18] sm:$0xf]
  %v50 = vld [vmem:[%s1 + $0x1c] sm:$0xf]
  %v51 = vld [vmem:[%s1 + $0x20] sm:$0xf]
  %v52 = vld [vmem:[%s1 + $0x24] sm:$0xf]
  %v53 = vld [vmem:[%s1 + $0x28] sm:$0xf]
  %v54 = vld [vmem:[%s1 + $0x2c] sm:$0xf]
  %v55 = vld [vmem:[%s1 + $0x30] sm:$0xf]
  %v56 = vld [vmem:[%s1 + $0x34] sm:$0xf]
  %v57 = vld [vmem:[%s1 + $0x38] sm:$0xf]
  %v58 = vld [vmem:[%s1 + $0x3c] sm:$0xf]
  %v59 = vld [vmem:[%s2] sm:$0xf]
  %v60 = vld [vmem:[%s2 + $0x4] sm:$0xf]
  %v61 = vld [vmem:[%s2 + $0x8] sm:$0xf]
  %v62 = vld [vmem:[%s2 + $0xc] sm:$0xf]
  %v63 = vld [vmem:[%s2 + $0x10] sm:$0xf]
  %v64 = vld [vmem:[%s2 + $0x14] sm:$0xf]
  %v65 = vld [vmem:[%s2 + $0x18] sm:$0xf]
  %v66 = vld [vmem:[%s2 + $0x1c] sm:$0xf]
  %v67 = vld [vmem:[%s2 + $0x20] sm:$0xf]
  %v68 = vld [vmem:[%s2 + $0x24] sm:$0xf]
  %v69 = vld [vmem:[%s2 + $0x28] sm:$0xf]
  %v70 = vld [vmem:[%s2 + $0x2c] sm:$0xf]
  %v71 = vld [vmem:[%s2 + $0x30] sm:$0xf]
  %v72 = vld [vmem:[%s2 + $0x34] sm:$0xf]
  %v73 = vld [vmem:[%s2 + $0x38] sm:$0xf]
  %v74 = vld [vmem:[%s2 + $0x3c] sm:$0xf]
  %v75 = vld [vmem:[%s3] sm:$0xf]
  %v76 = vld [vmem:[%s3 + $0x4] sm:$0xf]
  %v77 = vld [vmem:[%s3 + $0x8] sm:$0xf]
  %v78 = vld [vmem:[%s3 + $0xc] sm:$0xf]
  %v79 = vld [vmem:[%s3 + $0x10] sm:$0xf]
  %v80 = vld [vmem:[%s3 + $0x14] sm:$0xf]
  %v81 = vld [vmem:[%s3 + $0x18] sm:$0xf]
  %v82 = vld [vmem:[%s3 + $0x1c] sm:$0xf]
  %v83 = vld [vmem:[%s3 + $0x20] sm:$0xf]
  %v84 = vld [vmem:[%s3 + $0x24] sm:$0xf]
  %v85 = vld [vmem:[%s3 + $0x28] sm:$0xf]
  %v86 = vld [vmem:[%s3 + $0x2c] sm:$0xf]
  %v87 = vld [vmem:[%s3 + $0x30] sm:$0xf]
  %v88 = vld [vmem:[%s3 + $0x34] sm:$0xf]
  %v89 = vld [vmem:[%s3 + $0x38] sm:$0xf]
  %v90 = vld [vmem:[%s3 + $0x3c] sm:$0xf]
  %v107 = vunpack.c.l.b16 %v59
  %v108 = vunpack.c.l.b16 %v60
  %v109 = vunpack.c.l.b16 %v61
  %v110 = vunpack.c.l.b16 %v62
  %v111 = vunpack.c.l.b16 %v63
  %v112 = vunpack.c.l.b16 %v64
  %v113 = vunpack.c.l.b16 %v65
  %v114 = vunpack.c.l.b16 %v66
  %v115 = vunpack.c.l.b16 %v67
  %v116 = vunpack.c.l.b16 %v68
  %v117 = vunpack.c.l.b16 %v69
  %v118 = vunpack.c.l.b16 %v70
  %v119 = vunpack.c.l.b16 %v71
  %v120 = vunpack.c.l.b16 %v72
  %v121 = vunpack.c.l.b16 %v73
  %v122 = vunpack.c.l.b16 %v74
  %v123 = vpack.c.b16 %v108, %v107
  %v124 = vpack.c.b16 %v110, %v109
  %v125 = vpack.c.b16 %v112, %v111
  %v126 = vpack.c.b16 %v114, %v113
  %v127 = vpack.c.b16 %v116, %v115
  %v128 = vpack.c.b16 %v118, %v117
  %v129 = vpack.c.b16 %v120, %v119
  %v130 = vpack.c.b16 %v122, %v121
  %v155 = vunpack.c.l.b16 %v75
  %v156 = vunpack.c.l.b16 %v76
  %v157 = vunpack.c.l.b16 %v77
  %v158 = vunpack.c.l.b16 %v78
  %v159 = vunpack.c.l.b16 %v79
  %v160 = vunpack.c.l.b16 %v80
  %v161 = vunpack.c.l.b16 %v81
  %v162 = vunpack.c.l.b16 %v82
  %v163 = vunpack.c.l.b16 %v83
  %v164 = vunpack.c.l.b16 %v84
  %v165 = vunpack.c.l.b16 %v85
  %v166 = vunpack.c.l.b16 %v86
  %v167 = vunpack.c.l.b16 %v87
  %v168 = vunpack.c.l.b16 %v88
  %v169 = vunpack.c.l.b16 %v89
  %v170 = vunpack.c.l.b16 %v90
  %v171 = vpack.c.b16 %v156, %v155
  %v172 = vpack.c.b16 %v158, %v157
  %v173 = vpack.c.b16 %v160, %v159
  %v174 = vpack.c.b16 %v162, %v161
  %v175 = vpack.c.b16 %v164, %v163
  %v176 = vpack.c.b16 %v166, %v165
  %v177 = vpack.c.b16 %v168, %v167
  %v178 = vpack.c.b16 %v170, %v169
  %187 = vmatprep.subr.bf16.mxu0 0
  %188 = vmatpush1.bf16.msra.mxu0 %v171
  %189 = vmatprep.subr.bf16.mxu0 0
  %190 = vmatpush1.bf16.msra.mxu0 %v172
  %191 = vmatprep.subr.bf16.mxu0 0
  %192 = vmatpush1.bf16.msra.mxu0 %v173
  %193 = vmatprep.subr.bf16.mxu0 0
  %194 = vmatpush1.bf16.msra.mxu0 %v174
  %195 = vmatprep.subr.bf16.mxu0 0
  %196 = vmatpush1.bf16.msra.mxu0 %v175
  %197 = vmatprep.subr.bf16.mxu0 0
  %198 = vmatpush1.bf16.msra.mxu0 %v176
  %199 = vmatprep.subr.bf16.mxu0 0
  %200 = vmatpush1.bf16.msra.mxu0 %v177
  %201 = vmatprep.subr.bf16.mxu0 0
  %202 = vmatpush1.bf16.msra.mxu0 %v178
  %203 = vmatprep.subr.bf16.mxu0 0
  %204 = vmatpush1.bf16.msra.mxu0 0
  %205 = vmatprep.subr.bf16.mxu0 0
  %206 = vmatpush1.bf16.msra.mxu0 0
  %207 = vmatprep.subr.bf16.mxu0 0
  %208 = vmatpush1.bf16.msra.mxu0 0
  %209 = vmatprep.subr.bf16.mxu0 0
  %210 = vmatpush1.bf16.msra.mxu0 0
  %211 = vmatprep.subr.bf16.mxu0 0
  %212 = vmatpush1.bf16.msra.mxu0 0
  %213 = vmatprep.subr.bf16.mxu0 0
  %214 = vmatpush1.bf16.msra.mxu0 0
  %215 = vmatprep.subr.bf16.mxu0 0
  %216 = vmatpush1.bf16.msra.mxu0 0
  %217 = vmatprep.subr.bf16.mxu0 0
  %218 = vmatpush1.bf16.msra.mxu0 0
  %219 = vmatprep.mubr.bf16.mxu0 0
  %220 = vmatmul.mubr.bf16.gmra.mrb[0].mxu0 %v123
  %v221 = vpop.f32.mrb[0].mxu0
  %v222 = vadd.f32 0.0, %v221
  %v223 = vpop.f32.mrb[0].mxu0
  %v224 = vpop.f32.mrb[0].mxu0
  %v225 = vadd.f32 0.0, %v224
  %v226 = vpop.f32.mrb[0].mxu0
  %227 = vmatprep.mubr.bf16.mxu0 0
  %228 = vmatmul.mubr.bf16.gmra.mrb[0].mxu0 %v124
  %v229 = vpop.f32.mrb[0].mxu0
  %v230 = vadd.f32 0.0, %v229
  %v231 = vpop.f32.mrb[0].mxu0
  %v232 = vpop.f32.mrb[0].mxu0
  %v233 = vadd.f32 0.0, %v232
  %v234 = vpop.f32.mrb[0].mxu0
  %235 = vmatprep.mubr.bf16.mxu0 0
  %236 = vmatmul.mubr.bf16.gmra.mrb[0].mxu0 %v125
  %v237 = vpop.f32.mrb[0].mxu0
  %v238 = vadd.f32 0.0, %v237
  %v239 = vpop.f32.mrb[0].mxu0
  %v240 = vpop.f32.mrb[0].mxu0
  %v241 = vadd.f32 0.0, %v240
  %v242 = vpop.f32.mrb[0].mxu0
  %243 = vmatprep.mubr.bf16.mxu0 0
  %244 = vmatmul.mubr.bf16.gmra.mrb[0].mxu0 %v126
  %v245 = vpop.f32.mrb[0].mxu0
  %v246 = vadd.f32 0.0, %v245
  %v247 = vpop.f32.mrb[0].mxu0
  %v248 = vpop.f32.mrb[0].mxu0
  %v249 = vadd.f32 0.0, %v248
  %v250 = vpop.f32.mrb[0].mxu0
  %251 = vmatprep.mubr.bf16.mxu0 0
  %252 = vmatmul.mubr.bf16.gmra.mrb[0].mxu0 %v127
  %v253 = vpop.f32.mrb[0].mxu0
  %v254 = vadd.f32 0.0, %v253
  %v255 = vpop.f32.mrb[0].mxu0
  %v256 = vpop.f32.mrb[0].mxu0
  %v257 = vadd.f32 0.0, %v256
  %v258 = vpop.f32.mrb[0].mxu0
  %259 = vmatprep.mubr.bf16.mxu0 0
  %260 = vmatmul.mubr.bf16.gmra.mrb[0].mxu0 %v128
  %v261 = vpop.f32.mrb[0].mxu0
  %v262 = vadd.f32 0.0, %v261
  %v263 = vpop.f32.mrb[0].mxu0
  %v264 = vpop.f32.mrb[0].mxu0
  %v265 = vadd.f32 0.0, %v264
  %v266 = vpop.f32.mrb[0].mxu0
  %267 = vmatprep.mubr.bf16.mxu0 0
  %268 = vmatmul.mubr.bf16.gmra.mrb[0].mxu0 %v129
  %v269 = vpop.f32.mrb[0].mxu0
  %v270 = vadd.f32 0.0, %v269
  %v271 = vpop.f32.mrb[0].mxu0
  %v272 = vpop.f32.mrb[0].mxu0
  %v273 = vadd.f32 0.0, %v272
  %v274 = vpop.f32.mrb[0].mxu0
  %275 = vmatprep.mubr.bf16.mxu0 0
  %276 = vmatmul.mubr.bf16.gmra.mrb[0].mxu0 %v130
  %v277 = vpop.f32.mrb[0].mxu0
  %v278 = vadd.f32 0.0, %v277
  %v279 = vpop.f32.mrb[0].mxu0
  %v280 = vpop.f32.mrb[0].mxu0
  %v281 = vadd.f32 0.0, %v280
  %v282 = vpop.f32.mrb[0].mxu0
  %283 = vdwg.mxu0
  %v300 = vunpack.c.l.b16 %v27
  %v301 = vunpack.c.l.b16 %v28
  %v302 = vunpack.c.l.b16 %v29
  %v303 = vunpack.c.l.b16 %v30
  %v304 = vunpack.c.l.b16 %v31
  %v305 = vunpack.c.l.b16 %v32
  %v306 = vunpack.c.l.b16 %v33
  %v307 = vunpack.c.l.b16 %v34
  %v308 = vunpack.c.l.b16 %v35
  %v309 = vunpack.c.l.b16 %v36
  %v310 = vunpack.c.l.b16 %v37
  %v311 = vunpack.c.l.b16 %v38
  %v312 = vunpack.c.l.b16 %v39
  %v313 = vunpack.c.l.b16 %v40
  %v314 = vunpack.c.l.b16 %v41
  %v315 = vunpack.c.l.b16 %v42
  %v316 = vpack.c.b16 %v301, %v300
  %v317 = vpack.c.b16 %v303, %v302
  %v318 = vpack.c.b16 %v305, %v304
  %v319 = vpack.c.b16 %v307, %v306
  %v320 = vpack.c.b16 %v309, %v308
  %v321 = vpack.c.b16 %v311, %v310
  %v322 = vpack.c.b16 %v313, %v312
  %v323 = vpack.c.b16 %v315, %v314
  %v348 = vunpack.c.l.b16 %v43
  %v349 = vunpack.c.l.b16 %v44
  %v350 = vunpack.c.l.b16 %v45
  %v351 = vunpack.c.l.b16 %v46
  %v352 = vunpack.c.l.b16 %v47
  %v353 = vunpack.c.l.b16 %v48
  %v354 = vunpack.c.l.b16 %v49
  %v355 = vunpack.c.l.b16 %v50
  %v356 = vunpack.c.l.b16 %v51
  %v357 = vunpack.c.l.b16 %v52
  %v358 = vunpack.c.l.b16 %v53
  %v359 = vunpack.c.l.b16 %v54
  %v360 = vunpack.c.l.b16 %v55
  %v361 = vunpack.c.l.b16 %v56
  %v362 = vunpack.c.l.b16 %v57
  %v363 = vunpack.c.l.b16 %v58
  %v364 = vpack.c.b16 %v349, %v348
  %v365 = vpack.c.b16 %v351, %v350
  %v366 = vpack.c.b16 %v353, %v352
  %v367 = vpack.c.b16 %v355, %v354
  %v368 = vpack.c.b16 %v357, %v356
  %v369 = vpack.c.b16 %v359, %v358
  %v370 = vpack.c.b16 %v361, %v360
  %v371 = vpack.c.b16 %v363, %v362
  %380 = vmatprep.subr.bf16.mxu0 0
  %381 = vmatpush1.bf16.msra.mxu0 %v364
  %382 = vmatprep.subr.bf16.mxu0 0
  %383 = vmatpush1.bf16.msra.mxu0 %v365
  %384 = vmatprep.subr.bf16.mxu0 0
  %385 = vmatpush1.bf16.msra.mxu0 %v366
  %386 = vmatprep.subr.bf16.mxu0 0
  %387 = vmatpush1.bf16.msra.mxu0 %v367
  %388 = vmatprep.subr.bf16.mxu0 0
  %389 = vmatpush1.bf16.msra.mxu0 %v368
  %390 = vmatprep.subr.bf16.mxu0 0
  %391 = vmatpush1.bf16.msra.mxu0 %v369
  %392 = vmatprep.subr.bf16.mxu0 0
  %393 = vmatpush1.bf16.msra.mxu0 %v370
  %394 = vmatprep.subr.bf16.mxu0 0
  %395 = vmatpush1.bf16.msra.mxu0 %v371
  %396 = vmatprep.subr.bf16.mxu0 0
  %397 = vmatpush1.bf16.msra.mxu0 0
  %398 = vmatprep.subr.bf16.mxu0 0
  %399 = vmatpush1.bf16.msra.mxu0 0
  %400 = vmatprep.subr.bf16.mxu0 0
  %401 = vmatpush1.bf16.msra.mxu0 0
  %402 = vmatprep.subr.bf16.mxu0 0
  %403 = vmatpush1.bf16.msra.mxu0 0
  %404 = vmatprep.subr.bf16.mxu0 0
  %405 = vmatpush1.bf16.msra.mxu0 0
  %406 = vmatprep.subr.bf16.mxu0 0
  %407 = vmatpush1.bf16.msra.mxu0 0
  %408 = vmatprep.subr.bf16.mxu0 0
  %409 = vmatpush1.bf16.msra.mxu0 0
  %410 = vmatprep.subr.bf16.mxu0 0
  %411 = vmatpush1.bf16.msra.mxu0 0
  %412 = vmatprep.mubr.bf16.mxu0 0
  %413 = vmatmul.mubr.bf16.gmra.mrb[0].mxu0 %v316
  %v414 = vpop.f32.mrb[0].mxu0
  %v415 = vadd.f32 %v222, %v414
  %v416 = vpop.f32.mrb[0].mxu0
  %v417 = vpop.f32.mrb[0].mxu0
  %v418 = vadd.f32 %v225, %v417
  %v419 = vpop.f32.mrb[0].mxu0
  %420 = vmatprep.mubr.bf16.mxu0 0
  %421 = vmatmul.mubr.bf16.gmra.mrb[0].mxu0 %v317
  %v422 = vpop.f32.mrb[0].mxu0
  %v423 = vadd.f32 %v230, %v422
  %v424 = vpop.f32.mrb[0].mxu0
  %v425 = vpop.f32.mrb[0].mxu0
  %v426 = vadd.f32 %v233, %v425
  %v427 = vpop.f32.mrb[0].mxu0
  %428 = vmatprep.mubr.bf16.mxu0 0
  %429 = vmatmul.mubr.bf16.gmra.mrb[0].mxu0 %v318
  %v430 = vpop.f32.mrb[0].mxu0
  %v431 = vadd.f32 %v238, %v430
  %v432 = vpop.f32.mrb[0].mxu0
  %v433 = vpop.f32.mrb[0].mxu0
  %v434 = vadd.f32 %v241, %v433
  %v435 = vpop.f32.mrb[0].mxu0
  %436 = vmatprep.mubr.bf16.mxu0 0
  %437 = vmatmul.mubr.bf16.gmra.mrb[0].mxu0 %v319
  %v438 = vpop.f32.mrb[0].mxu0
  %v439 = vadd.f32 %v246, %v438
  %v440 = vpop.f32.mrb[0].mxu0
  %v441 = vpop.f32.mrb[0].mxu0
  %v442 = vadd.f32 %v249, %v441
  %v443 = vpop.f32.mrb[0].mxu0
  %444 = vmatprep.mubr.bf16.mxu0 0
  %445 = vmatmul.mubr.bf16.gmra.mrb[0].mxu0 %v320
  %v446 = vpop.f32.mrb[0].mxu0
  %v447 = vadd.f32 %v254, %v446
  %v448 = vpop.f32.mrb[0].mxu0
  %v449 = vpop.f32.mrb[0].mxu0
  %v450 = vadd.f32 %v257, %v449
  %v451 = vpop.f32.mrb[0].mxu0
  %452 = vmatprep.mubr.bf16.mxu0 0
  %453 = vmatmul.mubr.bf16.gmra.mrb[0].mxu0 %v321
  %v454 = vpop.f32.mrb[0].mxu0
  %v455 = vadd.f32 %v262, %v454
  %v456 = vpop.f32.mrb[0].mxu0
  %v457 = vpop.f32.mrb[0].mxu0
  %v458 = vadd.f32 %v265, %v457
  %v459 = vpop.f32.mrb[0].mxu0
  %460 = vmatprep.mubr.bf16.mxu0 0
  %461 = vmatmul.mubr.bf16.gmra.mrb[0].mxu0 %v322
  %v462 = vpop.f32.mrb[0].mxu0
  %v463 = vadd.f32 %v270, %v462
  %v464 = vpop.f32.mrb[0].mxu0
  %v465 = vpop.f32.mrb[0].mxu0
  %v466 = vadd.f32 %v273, %v465
  %v467 = vpop.f32.mrb[0].mxu0
  %468 = vmatprep.mubr.bf16.mxu0 0
  %469 = vmatmul.mubr.bf16.gmra.mrb[0].mxu0 %v323
  %v470 = vpop.f32.mrb[0].mxu0
  %v471 = vadd.f32 %v278, %v470
  %v472 = vpop.f32.mrb[0].mxu0
  %v473 = vpop.f32.mrb[0].mxu0
  %v474 = vadd.f32 %v281, %v473
  %v475 = vpop.f32.mrb[0].mxu0
  %476 = vdwg.mxu0
  %v477 = vld [vmem:[%s4] sm:$0xf]
  %v478 = vld [vmem:[%s4 + $0x4] sm:$0xf]
  %v479 = vld [vmem:[%s4 + $0x8] sm:$0xf]
  %v480 = vld [vmem:[%s4 + $0xc] sm:$0xf]
  %v481 = vld [vmem:[%s4 + $0x10] sm:$0xf]
  %v482 = vld [vmem:[%s4 + $0x14] sm:$0xf]
  %v483 = vld [vmem:[%s4 + $0x18] sm:$0xf]
  %v484 = vld [vmem:[%s4 + $0x1c] sm:$0xf]
  %v485 = vld [vmem:[%s4 + $0x20] sm:$0xf]
  %v486 = vld [vmem:[%s4 + $0x24] sm:$0xf]
  %v487 = vld [vmem:[%s4 + $0x28] sm:$0xf]
  %v488 = vld [vmem:[%s4 + $0x2c] sm:$0xf]
  %v489 = vld [vmem:[%s4 + $0x30] sm:$0xf]
  %v490 = vld [vmem:[%s4 + $0x34] sm:$0xf]
  %v491 = vld [vmem:[%s4 + $0x38] sm:$0xf]
  %v492 = vld [vmem:[%s4 + $0x3c] sm:$0xf]
  %v493 = vld [vmem:[%s5] sm:$0xf]
  %v494 = vld [vmem:[%s5 + $0x4] sm:$0xf]
  %v495 = vld [vmem:[%s5 + $0x8] sm:$0xf]
  %v496 = vld [vmem:[%s5 + $0xc] sm:$0xf]
  %v497 = vld [vmem:[%s5 + $0x10] sm:$0xf]
  %v498 = vld [vmem:[%s5 + $0x14] sm:$0xf]
  %v499 = vld [vmem:[%s5 + $0x18] sm:$0xf]
  %v500 = vld [vmem:[%s5 + $0x1c] sm:$0xf]
  %v501 = vld [vmem:[%s5 + $0x20] sm:$0xf]
  %v502 = vld [vmem:[%s5 + $0x24] sm:$0xf]
  %v503 = vld [vmem:[%s5 + $0x28] sm:$0xf]
  %v504 = vld [vmem:[%s5 + $0x2c] sm:$0xf]
  %v505 = vld [vmem:[%s5 + $0x30] sm:$0xf]
  %v506 = vld [vmem:[%s5 + $0x34] sm:$0xf]
  %v507 = vld [vmem:[%s5 + $0x38] sm:$0xf]
  %v508 = vld [vmem:[%s5 + $0x3c] sm:$0xf]
  %v525 = vunpack.c.l.b16 %v477
  %v526 = vunpack.c.l.b16 %v478
  %v527 = vunpack.c.l.b16 %v479
  %v528 = vunpack.c.l.b16 %v480
  %v529 = vunpack.c.l.b16 %v481
  %v530 = vunpack.c.l.b16 %v482
  %v531 = vunpack.c.l.b16 %v483
  %v532 = vunpack.c.l.b16 %v484
  %v533 = vunpack.c.l.b16 %v485
  %v534 = vunpack.c.l.b16 %v486
  %v535 = vunpack.c.l.b16 %v487
  %v536 = vunpack.c.l.b16 %v488
  %v537 = vunpack.c.l.b16 %v489
  %v538 = vunpack.c.l.b16 %v490
  %v539 = vunpack.c.l.b16 %v491
  %v540 = vunpack.c.l.b16 %v492
  %v541 = vpack.c.b16 %v526, %v525
  %v542 = vpack.c.b16 %v528, %v527
  %v543 = vpack.c.b16 %v530, %v529
  %v544 = vpack.c.b16 %v532, %v531
  %v545 = vpack.c.b16 %v534, %v533
  %v546 = vpack.c.b16 %v536, %v535
  %v547 = vpack.c.b16 %v538, %v537
  %v548 = vpack.c.b16 %v540, %v539
  %v573 = vunpack.c.l.b16 %v493
  %v574 = vunpack.c.l.b16 %v494
  %v575 = vunpack.c.l.b16 %v495
  %v576 = vunpack.c.l.b16 %v496
  %v577 = vunpack.c.l.b16 %v497
  %v578 = vunpack.c.l.b16 %v498
  %v579 = vunpack.c.l.b16 %v499
  %v580 = vunpack.c.l.b16 %v500
  %v581 = vunpack.c.l.b16 %v501
  %v582 = vunpack.c.l.b16 %v502
  %v583 = vunpack.c.l.b16 %v503
  %v584 = vunpack.c.l.b16 %v504
  %v585 = vunpack.c.l.b16 %v505
  %v586 = vunpack.c.l.b16 %v506
  %v587 = vunpack.c.l.b16 %v507
  %v588 = vunpack.c.l.b16 %v508
  %v589 = vpack.c.b16 %v574, %v573
  %v590 = vpack.c.b16 %v576, %v575
  %v591 = vpack.c.b16 %v578, %v577
  %v592 = vpack.c.b16 %v580, %v579
  %v593 = vpack.c.b16 %v582, %v581
  %v594 = vpack.c.b16 %v584, %v583
  %v595 = vpack.c.b16 %v586, %v585
  %v596 = vpack.c.b16 %v588, %v587
  %605 = vmatprep.subr.bf16.mxu0 0
  %606 = vmatpush1.bf16.msra.mxu0 %v589
  %607 = vmatprep.subr.bf16.mxu0 0
  %608 = vmatpush1.bf16.msra.mxu0 %v590
  %609 = vmatprep.subr.bf16.mxu0 0
  %610 = vmatpush1.bf16.msra.mxu0 %v591
  %611 = vmatprep.subr.bf16.mxu0 0
  %612 = vmatpush1.bf16.msra.mxu0 %v592
  %613 = vmatprep.subr.bf16.mxu0 0
  %614 = vmatpush1.bf16.msra.mxu0 %v593
  %615 = vmatprep.subr.bf16.mxu0 0
  %616 = vmatpush1.bf16.msra.mxu0 %v594
  %617 = vmatprep.subr.bf16.mxu0 0
  %618 = vmatpush1.bf16.msra.mxu0 %v595
  %619 = vmatprep.subr.bf16.mxu0 0
  %620 = vmatpush1.bf16.msra.mxu0 %v596
  %621 = vmatprep.subr.bf16.mxu0 0
  %622 = vmatpush1.bf16.msra.mxu0 0
  %623 = vmatprep.subr.bf16.mxu0 0
  %624 = vmatpush1.bf16.msra.mxu0 0
  %625 = vmatprep.subr.bf16.mxu0 0
  %626 = vmatpush1.bf16.msra.mxu0 0
  %627 = vmatprep.subr.bf16.mxu0 0
  %628 = vmatpush1.bf16.msra.mxu0 0
  %629 = vmatprep.subr.bf16.mxu0 0
  %630 = vmatpush1.bf16.msra.mxu0 0
  %631 = vmatprep.subr.bf16.mxu0 0
  %632 = vmatpush1.bf16.msra.mxu0 0
  %633 = vmatprep.subr.bf16.mxu0 0
  %634 = vmatpush1.bf16.msra.mxu0 0
  %635 = vmatprep.subr.bf16.mxu0 0
  %636 = vmatpush1.bf16.msra.mxu0 0
  %637 = vmatprep.mubr.bf16.mxu0 0
  %638 = vmatmul.mubr.bf16.gmra.mrb[0].mxu0 %v541
  %v639 = vpop.f32.mrb[0].mxu0
  %v640 = vadd.f32 0.0, %v639
  %v641 = vpop.f32.mrb[0].mxu0
  %v642 = vpop.f32.mrb[0].mxu0
  %v643 = vadd.f32 0.0, %v642
  %v644 = vpop.f32.mrb[0].mxu0
  %645 = vmatprep.mubr.bf16.mxu0 0
  %646 = vmatmul.mubr.bf16.gmra.mrb[0].mxu0 %v542
  %v647 = vpop.f32.mrb[0].mxu0
  %v648 = vadd.f32 0.0, %v647
  %v649 = vpop.f32.mrb[0].mxu0
  %v650 = vpop.f32.mrb[0].mxu0
  %v651 = vadd.f32 0.0, %v650
  %v652 = vpop.f32.mrb[0].mxu0
  %653 = vmatprep.mubr.bf16.mxu0 0
  %654 = vmatmul.mubr.bf16.gmra.mrb[0].mxu0 %v543
  %v655 = vpop.f32.mrb[0].mxu0
  %v656 = vadd.f32 0.0, %v655
  %v657 = vpop.f32.mrb[0].mxu0
  %v658 = vpop.f32.mrb[0].mxu0
  %v659 = vadd.f32 0.0, %v658
  %v660 = vpop.f32.mrb[0].mxu0
  %661 = vmatprep.mubr.bf16.mxu0 0
  %662 = vmatmul.mubr.bf16.gmra.mrb[0].mxu0 %v544
  %v663 = vpop.f32.mrb[0].mxu0
  %v664 = vadd.f32 0.0, %v663
  %v665 = vpop.f32.mrb[0].mxu0
  %v666 = vpop.f32.mrb[0].mxu0
  %v667 = vadd.f32 0.0, %v666
  %v668 = vpop.f32.mrb[0].mxu0
  %669 = vmatprep.mubr.bf16.mxu0 0
  %670 = vmatmul.mubr.bf16.gmra.mrb[0].mxu0 %v545
  %v671 = vpop.f32.mrb[0].mxu0
  %v672 = vadd.f32 0.0, %v671
  %v673 = vpop.f32.mrb[0].mxu0
  %v674 = vpop.f32.mrb[0].mxu0
  %v675 = vadd.f32 0.0, %v674
  %v676 = vpop.f32.mrb[0].mxu0
  %677 = vmatprep.mubr.bf16.mxu0 0
  %678 = vmatmul.mubr.bf16.gmra.mrb[0].mxu0 %v546
  %v679 = vpop.f32.mrb[0].mxu0
  %v680 = vadd.f32 0.0, %v679
  %v681 = vpop.f32.mrb[0].mxu0
  %v682 = vpop.f32.mrb[0].mxu0
  %v683 = vadd.f32 0.0, %v682
  %v684 = vpop.f32.mrb[0].mxu0
  %685 = vmatprep.mubr.bf16.mxu0 0
  %686 = vmatmul.mubr.bf16.gmra.mrb[0].mxu0 %v547
  %v687 = vpop.f32.mrb[0].mxu0
  %v688 = vadd.f32 0.0, %v687
  %v689 = vpop.f32.mrb[0].mxu0
  %v690 = vpop.f32.mrb[0].mxu0
  %v691 = vadd.f32 0.0, %v690
  %v692 = vpop.f32.mrb[0].mxu0
  %693 = vmatprep.mubr.bf16.mxu0 0
  %694 = vmatmul.mubr.bf16.gmra.mrb[0].mxu0 %v548
  %v695 = vpop.f32.mrb[0].mxu0
  %v696 = vadd.f32 0.0, %v695
  %v697 = vpop.f32.mrb[0].mxu0
  %v698 = vpop.f32.mrb[0].mxu0
  %v699 = vadd.f32 0.0, %v698
  %v700 = vpop.f32.mrb[0].mxu0
  %701 = vdwg.mxu0
  %v702 = vadd.f32 %v415, %v640
  %v703 = vadd.f32 %v418, %v643
  %v704 = vadd.f32 %v423, %v648
  %v705 = vadd.f32 %v426, %v651
  %v706 = vadd.f32 %v431, %v656
  %v707 = vadd.f32 %v434, %v659
  %v708 = vadd.f32 %v439, %v664
  %v709 = vadd.f32 %v442, %v667
  %v710 = vadd.f32 %v447, %v672
  %v711 = vadd.f32 %v450, %v675
  %v712 = vadd.f32 %v455, %v680
  %v713 = vadd.f32 %v458, %v683
  %v714 = vadd.f32 %v463, %v688
  %v715 = vadd.f32 %v466, %v691
  %v716 = vadd.f32 %v471, %v696
  %v717 = vadd.f32 %v474, %v699
  %v718 = vld [vmem:[%s6] sm:$0x1]
  %v720 = vlaneseq
  %v721 = vshrl.u32 %v720, 7
  %v722 = vsub.s32 0, %v721
  %v723 = vrot.slane %v718, %v722
  %v725 = vadd.f32 %v702, %v723
  %v726 = vadd.f32 %v703, %v723
  %v727 = vadd.f32 %v704, %v723
  %v728 = vadd.f32 %v705, %v723
  %v729 = vadd.f32 %v706, %v723
  %v730 = vadd.f32 %v707, %v723
  %v731 = vadd.f32 %v708, %v723
  %v732 = vadd.f32 %v709, %v723
  %v733 = vadd.f32 %v710, %v723
  %v734 = vadd.f32 %v711, %v723
  %v735 = vadd.f32 %v712, %v723
  %v736 = vadd.f32 %v713, %v723
  %v737 = vadd.f32 %v714, %v723
  %v738 = vadd.f32 %v715, %v723
  %v739 = vadd.f32 %v716, %v723
  %v740 = vadd.f32 %v717, %v723
  %741 = vst [vmem:[%s7] sm:$0xff] %v725
  %742 = vst [vmem:[%s7 + $0x8] sm:$0xff] %v726
  %743 = vst [vmem:[%s7 + $0x10] sm:$0xff] %v727
  %744 = vst [vmem:[%s7 + $0x18] sm:$0xff] %v728
  %745 = vst [vmem:[%s7 + $0x20] sm:$0xff] %v729
  %746 = vst [vmem:[%s7 + $0x28] sm:$0xff] %v730
  %747 = vst [vmem:[%s7 + $0x30] sm:$0xff] %v731
  %748 = vst [vmem:[%s7 + $0x38] sm:$0xff] %v732
  %749 = vst [vmem:[%s7 + $0x40] sm:$0xff] %v733
  %750 = vst [vmem:[%s7 + $0x48] sm:$0xff] %v734
  %751 = vst [vmem:[%s7 + $0x50] sm:$0xff] %v735
  %752 = vst [vmem:[%s7 + $0x58] sm:$0xff] %v736
  %753 = vst [vmem:[%s7 + $0x60] sm:$0xff] %v737
  %754 = vst [vmem:[%s7 + $0x68] sm:$0xff] %v738
  %755 = vst [vmem:[%s7 + $0x70] sm:$0xff] %v739
  %756 = vst [vmem:[%s7 + $0x78] sm:$0xff] %v740
  // Predicated region
  $region30: #{gin_forward.5} parent=0 // pred_check
    _
  $region31: #{gin_forward.5} parent=0 // pred_check_branch
    %758 = sbr.rel (0) target = $region33
  $region32: #{gin_forward.5} parent=0 // pred_region
    _
  $region33: #{gin_forward.5} parent=0 // pred_fallthru
    _
  // Predicated region
  $region34: #{gin_forward.5} parent=0 // pred_check
    _
  $region35: #{gin_forward.5} parent=0 // pred_check_branch
    %760 = sbr.rel (0) target = $region37
  $region36: #{gin_forward.5} parent=0 // pred_region
    _
  $region37: #{gin_forward.5} parent=0 // pred_fallthru
    _

// kernel: gin_forward.3
$region0: #{gin_forward.3}
  #allocation0 [shape = 'u32[]', space=smem, size = 0x4, offset = 0x4, fixed_abs, tag = 'smem constant byte address 0x4 - core index']
  #allocation1 [shape = 'u32[144,128]{1,0:T(1,128)}', space=vmem, size = 0x12000, scoped, tag = 'internal scratch']
  #allocation2 [shape = 'f32[128,128]{1,0:T(8,128)}', space=vmem, size = 0x10000, scoped, tag = 'scratch operand']
  #allocation3 [shape = 'f32[1,1]{1,0:T(1,128)S(6)}', space=smem, size = 0x200, scoped, tag = 'scoped memory for gin_forward.3']
  %s0 = inlined_call_operand.<no memory space> [shape: f32[1,1], index: 0, kind: input, shape index: {}]
  %s1 = inlined_call_operand.vmem [shape: s8[128,128], index: 1, kind: input, shape index: {}]
  %s2 = inlined_call_operand.vmem [shape: bf16[128,128], index: 2, kind: input, shape index: {}, may-alias: {2,3}]
  %s3 = inlined_call_operand.vmem [shape: bf16[128,128], index: 3, kind: input, shape index: {}, may-alias: {2,3}]
  %s4 = inlined_call_operand.vmem [shape: bf16[128,128], index: 4, kind: input, shape index: {}]
  %s5 = inlined_call_operand.vmem [shape: f32[1,128], index: 5, kind: input, shape index: {}]
  %s6 = inlined_call_operand.vmem [shape: bf16[128,128], index: 6, kind: input, shape index: {}]
  %s7 = inlined_call_operand.vmem [shape: f32[1,128], index: 7, kind: input, shape index: {}]
  %s8 = inlined_call_operand.vmem [shape: bf16[128,128], index: 8, kind: output, shape index: {}]
  %s9 = sld [smem:[#allocation0]]
  $region50: #{gin_forward.3} parent=0
    _
  %s11 = ssub.s32 1, %s9
  %s12 = scalar_select 0, %s11, %s9
  %13 = sst [smem:[#allocation3]] %s0
  // Predicated region
  $region2: #{gin_forward.3} parent=0 // pred_check
    _
  $region3: #{gin_forward.3} parent=0 // pred_check_branch
    %15 = sbr.rel (0) target = $region5
  $region4: #{gin_forward.3} parent=0 // pred_region
    _
  $region5: #{gin_forward.3} parent=0 // pred_fallthru
    _
  // Predicated region
  $region6: #{gin_forward.3} parent=0 // pred_check
    _
  $region7: #{gin_forward.3} parent=0 // pred_check_branch
    %17 = sbr.rel (0) target = $region9
  $region8: #{gin_forward.3} parent=0 // pred_region
    _
  $region9: #{gin_forward.3} parent=0 // pred_fallthru
    _
  // Predicated region
  $region10: #{gin_forward.3} parent=0 // pred_check
    _
  $region11: #{gin_forward.3} parent=0 // pred_check_branch
    %19 = sbr.rel (0) target = $region13
  $region12: #{gin_forward.3} parent=0 // pred_region
    _
  $region13: #{gin_forward.3} parent=0 // pred_fallthru
    _
  // Predicated region
  $region14: #{gin_forward.3} parent=0 // pred_check
    _
  $region15: #{gin_forward.3} parent=0 // pred_check_branch
    %21 = sbr.rel (0) target = $region17
  $region16: #{gin_forward.3} parent=0 // pred_region
    _
  $region17: #{gin_forward.3} parent=0 // pred_fallthru
    _
  // Predicated region
  $region18: #{gin_forward.3} parent=0 // pred_check
    _
  $region19: #{gin_forward.3} parent=0 // pred_check_branch
    %23 = sbr.rel (0) target = $region21
  $region20: #{gin_forward.3} parent=0 // pred_region
    _
  $region21: #{gin_forward.3} parent=0 // pred_fallthru
    _
  // Predicated region
  $region22: #{gin_forward.3} parent=0 // pred_check
    _
  $region23: #{gin_forward.3} parent=0 // pred_check_branch
    %25 = sbr.rel (0) target = $region25
  $region24: #{gin_forward.3} parent=0 // pred_region
    _
  $region25: #{gin_forward.3} parent=0 // pred_fallthru
    _
  // Predicated region
  $region26: #{gin_forward.3} parent=0 // pred_check
    _
  $region27: #{gin_forward.3} parent=0 // pred_check_branch
    %27 = sbr.rel (0) target = $region29
  $region28: #{gin_forward.3} parent=0 // pred_region
    _
  $region29: #{gin_forward.3} parent=0 // pred_fallthru
    _
  // Predicated region
  $region30: #{gin_forward.3} parent=0 // pred_check
    _
  $region31: #{gin_forward.3} parent=0 // pred_check_branch
    %29 = sbr.rel (0) target = $region33
  $region32: #{gin_forward.3} parent=0 // pred_region
    _
  $region33: #{gin_forward.3} parent=0 // pred_fallthru
    _
  %p31 = scmp.eq.s32.totalorder 0, 0
  // Predicated region
  $region34: #{gin_forward.3} parent=0 // pred_check
    %p32 = pneg %p31
  $region35: #{gin_forward.3} parent=0 // pred_check_branch
    %34 = sbr.rel (%p32) target = $region37
  $region36: #{gin_forward.3} parent=0 // pred_region
    %35 = vst [vmem:[#allocation2] sm:$0xff] 0.0
    %36 = vst [vmem:[#allocation2 + $0x8] sm:$0xff] 0.0
    %37 = vst [vmem:[#allocation2 + $0x10] sm:$0xff] 0.0
    %38 = vst [vmem:[#allocation2 + $0x18] sm:$0xff] 0.0
    %39 = vst [vmem:[#allocation2 + $0x20] sm:$0xff] 0.0
    %40 = vst [vmem:[#allocation2 + $0x28] sm:$0xff] 0.0
    %41 = vst [vmem:[#allocation2 + $0x30] sm:$0xff] 0.0
    %42 = vst [vmem:[#allocation2 + $0x38] sm:$0xff] 0.0
    %43 = vst [vmem:[#allocation2 + $0x40] sm:$0xff] 0.0
    %44 = vst [vmem:[#allocation2 + $0x48] sm:$0xff] 0.0
    %45 = vst [vmem:[#allocation2 + $0x50] sm:$0xff] 0.0
    %46 = vst [vmem:[#allocation2 + $0x58] sm:$0xff] 0.0
    %47 = vst [vmem:[#allocation2 + $0x60] sm:$0xff] 0.0
    %48 = vst [vmem:[#allocation2 + $0x68] sm:$0xff] 0.0
    %49 = vst [vmem:[#allocation2 + $0x70] sm:$0xff] 0.0
    %50 = vst [vmem:[#allocation2 + $0x78] sm:$0xff] 0.0
  $region37: #{gin_forward.3} parent=0 // pred_fallthru
    _
  %v51 = vld [vmem:[%s1] sm:$0x3]
  %v52 = vld [vmem:[%s1 + $0x2] sm:$0x3]
  %v53 = vld [vmem:[%s1 + $0x4] sm:$0x3]
  %v54 = vld [vmem:[%s1 + $0x6] sm:$0x3]
  %v55 = vld [vmem:[%s1 + $0x8] sm:$0x3]
  %v56 = vld [vmem:[%s1 + $0xa] sm:$0x3]
  %v57 = vld [vmem:[%s1 + $0xc] sm:$0x3]
  %v58 = vld [vmem:[%s1 + $0xe] sm:$0x3]
  %v59 = vld [vmem:[%s1 + $0x10] sm:$0x3]
  %v60 = vld [vmem:[%s1 + $0x12] sm:$0x3]
  %v61 = vld [vmem:[%s1 + $0x14] sm:$0x3]
  %v62 = vld [vmem:[%s1 + $0x16] sm:$0x3]
  %v63 = vld [vmem:[%s1 + $0x18] sm:$0x3]
  %v64 = vld [vmem:[%s1 + $0x1a] sm:$0x3]
  %v65 = vld [vmem:[%s1 + $0x1c] sm:$0x3]
  %v66 = vld [vmem:[%s1 + $0x1e] sm:$0x3]
  %v67 = vunpack.c.l.s8.bf16 %v51
  %v68 = vunpack.c.l.s8.bf16 %v52
  %v69 = vunpack.c.l.s8.bf16 %v53
  %v70 = vunpack.c.l.s8.bf16 %v54
  %v71 = vunpack.c.l.s8.bf16 %v55
  %v72 = vunpack.c.l.s8.bf16 %v56
  %v73 = vunpack.c.l.s8.bf16 %v57
  %v74 = vunpack.c.l.s8.bf16 %v58
  %v75 = vunpack.c.l.s8.bf16 %v59
  %v76 = vunpack.c.l.s8.bf16 %v60
  %v77 = vunpack.c.l.s8.bf16 %v61
  %v78 = vunpack.c.l.s8.bf16 %v62
  %v79 = vunpack.c.l.s8.bf16 %v63
  %v80 = vunpack.c.l.s8.bf16 %v64
  %v81 = vunpack.c.l.s8.bf16 %v65
  %v82 = vunpack.c.l.s8.bf16 %v66
  %v83 = vld [vmem:[#allocation2] sm:$0xff]
  %v84 = vld [vmem:[#allocation2 + $0x8] sm:$0xff]
  %v85 = vld [vmem:[#allocation2 + $0x10] sm:$0xff]
  %v86 = vld [vmem:[#allocation2 + $0x18] sm:$0xff]
  %v87 = vld [vmem:[#allocation2 + $0x20] sm:$0xff]
  %v88 = vld [vmem:[#allocation2 + $0x28] sm:$0xff]
  %v89 = vld [vmem:[#allocation2 + $0x30] sm:$0xff]
  %v90 = vld [vmem:[#allocation2 + $0x38] sm:$0xff]
  %v91 = vld [vmem:[#allocation2 + $0x40] sm:$0xff]
  %v92 = vld [vmem:[#allocation2 + $0x48] sm:$0xff]
  %v93 = vld [vmem:[#allocation2 + $0x50] sm:$0xff]
  %v94 = vld [vmem:[#allocation2 + $0x58] sm:$0xff]
  %v95 = vld [vmem:[#allocation2 + $0x60] sm:$0xff]
  %v96 = vld [vmem:[#allocation2 + $0x68] sm:$0xff]
  %v97 = vld [vmem:[#allocation2 + $0x70] sm:$0xff]
  %v98 = vld [vmem:[#allocation2 + $0x78] sm:$0xff]
  %v99 = vld [vmem:[%s2] sm:$0xf]
  %v100 = vld [vmem:[%s2 + $0x4] sm:$0xf]
  %v101 = vld [vmem:[%s2 + $0x8] sm:$0xf]
  %v102 = vld [vmem:[%s2 + $0xc] sm:$0xf]
  %v103 = vld [vmem:[%s2 + $0x10] sm:$0xf]
  %v104 = vld [vmem:[%s2 + $0x14] sm:$0xf]
  %v105 = vld [vmem:[%s2 + $0x18] sm:$0xf]
  %v106 = vld [vmem:[%s2 + $0x1c] sm:$0xf]
  %v107 = vld [vmem:[%s2 + $0x20] sm:$0xf]
  %v108 = vld [vmem:[%s2 + $0x24] sm:$0xf]
  %v109 = vld [vmem:[%s2 + $0x28] sm:$0xf]
  %v110 = vld [vmem:[%s2 + $0x2c] sm:$0xf]
  %v111 = vld [vmem:[%s2 + $0x30] sm:$0xf]
  %v112 = vld [vmem:[%s2 + $0x34] sm:$0xf]
  %v113 = vld [vmem:[%s2 + $0x38] sm:$0xf]
  %v114 = vld [vmem:[%s2 + $0x3c] sm:$0xf]
  %v131 = vunpack.c.l.b16 %v67
  %v132 = vunpack.c.l.b16 %v68
  %v133 = vunpack.c.l.b16 %v69
  %v134 = vunpack.c.l.b16 %v70
  %v135 = vunpack.c.l.b16 %v71
  %v136 = vunpack.c.l.b16 %v72
  %v137 = vunpack.c.l.b16 %v73
  %v138 = vunpack.c.l.b16 %v74
  %v139 = vunpack.c.l.b16 %v75
  %v140 = vunpack.c.l.b16 %v76
  %v141 = vunpack.c.l.b16 %v77
  %v142 = vunpack.c.l.b16 %v78
  %v143 = vunpack.c.l.b16 %v79
  %v144 = vunpack.c.l.b16 %v80
  %v145 = vunpack.c.l.b16 %v81
  %v146 = vunpack.c.l.b16 %v82
  %v147 = vpack.c.b16 %v132, %v131
  %v148 = vpack.c.b16 %v134, %v133
  %v149 = vpack.c.b16 %v136, %v135
  %v150 = vpack.c.b16 %v138, %v137
  %v151 = vpack.c.b16 %v140, %v139
  %v152 = vpack.c.b16 %v142, %v141
  %v153 = vpack.c.b16 %v144, %v143
  %v154 = vpack.c.b16 %v146, %v145
  %v179 = vunpack.c.l.b16 %v99
  %v180 = vunpack.c.l.b16 %v100
  %v181 = vunpack.c.l.b16 %v101
  %v182 = vunpack.c.l.b16 %v102
  %v183 = vunpack.c.l.b16 %v103
  %v184 = vunpack.c.l.b16 %v104
  %v185 = vunpack.c.l.b16 %v105
  %v186 = vunpack.c.l.b16 %v106
  %v187 = vunpack.c.l.b16 %v107
  %v188 = vunpack.c.l.b16 %v108
  %v189 = vunpack.c.l.b16 %v109
  %v190 = vunpack.c.l.b16 %v110
  %v191 = vunpack.c.l.b16 %v111
  %v192 = vunpack.c.l.b16 %v112
  %v193 = vunpack.c.l.b16 %v113
  %v194 = vunpack.c.l.b16 %v114
  %v195 = vpack.c.b16 %v180, %v179
  %v196 = vpack.c.b16 %v182, %v181
  %v197 = vpack.c.b16 %v184, %v183
  %v198 = vpack.c.b16 %v186, %v185
  %v199 = vpack.c.b16 %v188, %v187
  %v200 = vpack.c.b16 %v190, %v189
  %v201 = vpack.c.b16 %v192, %v191
  %v202 = vpack.c.b16 %v194, %v193
  %211 = vmatprep.subr.bf16.mxu0 0
  %212 = vmatpush1.bf16.msra.mxu0 %v195
  %213 = vmatprep.subr.bf16.mxu0 0
  %214 = vmatpush1.bf16.msra.mxu0 %v196
  %215 = vmatprep.subr.bf16.mxu0 0
  %216 = vmatpush1.bf16.msra.mxu0 %v197
  %217 = vmatprep.subr.bf16.mxu0 0
  %218 = vmatpush1.bf16.msra.mxu0 %v198
  %219 = vmatprep.subr.bf16.mxu0 0
  %220 = vmatpush1.bf16.msra.mxu0 %v199
  %221 = vmatprep.subr.bf16.mxu0 0
  %222 = vmatpush1.bf16.msra.mxu0 %v200
  %223 = vmatprep.subr.bf16.mxu0 0
  %224 = vmatpush1.bf16.msra.mxu0 %v201
  %225 = vmatprep.subr.bf16.mxu0 0
  %226 = vmatpush1.bf16.msra.mxu0 %v202
  %227 = vmatprep.subr.bf16.mxu0 0
  %228 = vmatpush1.bf16.msra.mxu0 0
  %229 = vmatprep.subr.bf16.mxu0 0
  %230 = vmatpush1.bf16.msra.mxu0 0
  %231 = vmatprep.subr.bf16.mxu0 0
  %232 = vmatpush1.bf16.msra.mxu0 0
  %233 = vmatprep.subr.bf16.mxu0 0
  %234 = vmatpush1.bf16.msra.mxu0 0
  %235 = vmatprep.subr.bf16.mxu0 0
  %236 = vmatpush1.bf16.msra.mxu0 0
  %237 = vmatprep.subr.bf16.mxu0 0
  %238 = vmatpush1.bf16.msra.mxu0 0
  %239 = vmatprep.subr.bf16.mxu0 0
  %240 = vmatpush1.bf16.msra.mxu0 0
  %241 = vmatprep.subr.bf16.mxu0 0
  %242 = vmatpush1.bf16.msra.mxu0 0
  %243 = vmatprep.mubr.bf16.mxu0 0
  %244 = vmatmul.mubr.bf16.gmra.mrb[0].mxu0 %v147
  %v245 = vpop.f32.mrb[0].mxu0
  %v246 = vadd.f32 0.0, %v245
  %v247 = vpop.f32.mrb[0].mxu0
  %v248 = vpop.f32.mrb[0].mxu0
  %v249 = vadd.f32 0.0, %v248
  %v250 = vpop.f32.mrb[0].mxu0
  %251 = vmatprep.mubr.bf16.mxu0 0
  %252 = vmatmul.mubr.bf16.gmra.mrb[0].mxu0 %v148
  %v253 = vpop.f32.mrb[0].mxu0
  %v254 = vadd.f32 0.0, %v253
  %v255 = vpop.f32.mrb[0].mxu0
  %v256 = vpop.f32.mrb[0].mxu0
  %v257 = vadd.f32 0.0, %v256
  %v258 = vpop.f32.mrb[0].mxu0
  %259 = vmatprep.mubr.bf16.mxu0 0
  %260 = vmatmul.mubr.bf16.gmra.mrb[0].mxu0 %v149
  %v261 = vpop.f32.mrb[0].mxu0
  %v262 = vadd.f32 0.0, %v261
  %v263 = vpop.f32.mrb[0].mxu0
  %v264 = vpop.f32.mrb[0].mxu0
  %v265 = vadd.f32 0.0, %v264
  %v266 = vpop.f32.mrb[0].mxu0
  %267 = vmatprep.mubr.bf16.mxu0 0
  %268 = vmatmul.mubr.bf16.gmra.mrb[0].mxu0 %v150
  %v269 = vpop.f32.mrb[0].mxu0
  %v270 = vadd.f32 0.0, %v269
  %v271 = vpop.f32.mrb[0].mxu0
  %v272 = vpop.f32.mrb[0].mxu0
  %v273 = vadd.f32 0.0, %v272
  %v274 = vpop.f32.mrb[0].mxu0
  %275 = vmatprep.mubr.bf16.mxu0 0
  %276 = vmatmul.mubr.bf16.gmra.mrb[0].mxu0 %v151
  %v277 = vpop.f32.mrb[0].mxu0
  %v278 = vadd.f32 0.0, %v277
  %v279 = vpop.f32.mrb[0].mxu0
  %v280 = vpop.f32.mrb[0].mxu0
  %v281 = vadd.f32 0.0, %v280
  %v282 = vpop.f32.mrb[0].mxu0
  %283 = vmatprep.mubr.bf16.mxu0 0
  %284 = vmatmul.mubr.bf16.gmra.mrb[0].mxu0 %v152
  %v285 = vpop.f32.mrb[0].mxu0
  %v286 = vadd.f32 0.0, %v285
  %v287 = vpop.f32.mrb[0].mxu0
  %v288 = vpop.f32.mrb[0].mxu0
  %v289 = vadd.f32 0.0, %v288
  %v290 = vpop.f32.mrb[0].mxu0
  %291 = vmatprep.mubr.bf16.mxu0 0
  %292 = vmatmul.mubr.bf16.gmra.mrb[0].mxu0 %v153
  %v293 = vpop.f32.mrb[0].mxu0
  %v294 = vadd.f32 0.0, %v293
  %v295 = vpop.f32.mrb[0].mxu0
  %v296 = vpop.f32.mrb[0].mxu0
  %v297 = vadd.f32 0.0, %v296
  %v298 = vpop.f32.mrb[0].mxu0
  %299 = vmatprep.mubr.bf16.mxu0 0
  %300 = vmatmul.mubr.bf16.gmra.mrb[0].mxu0 %v154
  %v301 = vpop.f32.mrb[0].mxu0
  %v302 = vadd.f32 0.0, %v301
  %v303 = vpop.f32.mrb[0].mxu0
  %v304 = vpop.f32.mrb[0].mxu0
  %v305 = vadd.f32 0.0, %v304
  %v306 = vpop.f32.mrb[0].mxu0
  %307 = vdwg.mxu0
  %v308 = vadd.f32 %v83, %v246
  %v309 = vadd.f32 %v84, %v249
  %v310 = vadd.f32 %v85, %v254
  %v311 = vadd.f32 %v86, %v257
  %v312 = vadd.f32 %v87, %v262
  %v313 = vadd.f32 %v88, %v265
  %v314 = vadd.f32 %v89, %v270
  %v315 = vadd.f32 %v90, %v273
  %v316 = vadd.f32 %v91, %v278
  %v317 = vadd.f32 %v92, %v281
  %v318 = vadd.f32 %v93, %v286
  %v319 = vadd.f32 %v94, %v289
  %v320 = vadd.f32 %v95, %v294
  %v321 = vadd.f32 %v96, %v297
  %v322 = vadd.f32 %v97, %v302
  %v323 = vadd.f32 %v98, %v305
  %324 = vst [vmem:[#allocation2] sm:$0xff] %v308
  %325 = vst [vmem:[#allocation2 + $0x8] sm:$0xff] %v309
  %326 = vst [vmem:[#allocation2 + $0x10] sm:$0xff] %v310
  %327 = vst [vmem:[#allocation2 + $0x18] sm:$0xff] %v311
  %328 = vst [vmem:[#allocation2 + $0x20] sm:$0xff] %v312
  %329 = vst [vmem:[#allocation2 + $0x28] sm:$0xff] %v313
  %330 = vst [vmem:[#allocation2 + $0x30] sm:$0xff] %v314
  %331 = vst [vmem:[#allocation2 + $0x38] sm:$0xff] %v315
  %332 = vst [vmem:[#allocation2 + $0x40] sm:$0xff] %v316
  %333 = vst [vmem:[#allocation2 + $0x48] sm:$0xff] %v317
  %334 = vst [vmem:[#allocation2 + $0x50] sm:$0xff] %v318
  %335 = vst [vmem:[#allocation2 + $0x58] sm:$0xff] %v319
  %336 = vst [vmem:[#allocation2 + $0x60] sm:$0xff] %v320
  %337 = vst [vmem:[#allocation2 + $0x68] sm:$0xff] %v321
  %338 = vst [vmem:[#allocation2 + $0x70] sm:$0xff] %v322
  %339 = vst [vmem:[#allocation2 + $0x78] sm:$0xff] %v323
  // Predicated region
  $region38: #{gin_forward.3} parent=0 // pred_check
    %p340 = pneg %p31
  $region39: #{gin_forward.3} parent=0 // pred_check_branch
    %342 = sbr.rel (%p340) target = $region41
  $region40: #{gin_forward.3} parent=0 // pred_region
    %s343 = sld [smem:[#allocation3]]
    %v344 = vld [vmem:[#allocation2] sm:$0xff]
    %v345 = vld [vmem:[#allocation2 + $0x8] sm:$0xff]
    %v346 = vld [vmem:[#allocation2 + $0x10] sm:$0xff]
    %v347 = vld [vmem:[#allocation2 + $0x18] sm:$0xff]
    %v348 = vld [vmem:[#allocation2 + $0x20] sm:$0xff]
    %v349 = vld [vmem:[#allocation2 + $0x28] sm:$0xff]
    %v350 = vld [vmem:[#allocation2 + $0x30] sm:$0xff]
    %v351 = vld [vmem:[#allocation2 + $0x38] sm:$0xff]
    %v352 = vld [vmem:[#allocation2 + $0x40] sm:$0xff]
    %v353 = vld [vmem:[#allocation2 + $0x48] sm:$0xff]
    %v354 = vld [vmem:[#allocation2 + $0x50] sm:$0xff]
    %v355 = vld [vmem:[#allocation2 + $0x58] sm:$0xff]
    %v356 = vld [vmem:[#allocation2 + $0x60] sm:$0xff]
    %v357 = vld [vmem:[#allocation2 + $0x68] sm:$0xff]
    %v358 = vld [vmem:[#allocation2 + $0x70] sm:$0xff]
    %v359 = vld [vmem:[#allocation2 + $0x78] sm:$0xff]
    %s360 = sadd.f32 %s343, 1.0
    %v361 = vld [vmem:[%s3] sm:$0xf]
    %v362 = vld [vmem:[%s3 + $0x4] sm:$0xf]
    %v363 = vld [vmem:[%s3 + $0x8] sm:$0xf]
    %v364 = vld [vmem:[%s3 + $0xc] sm:$0xf]
    %v365 = vld [vmem:[%s3 + $0x10] sm:$0xf]
    %v366 = vld [vmem:[%s3 + $0x14] sm:$0xf]
    %v367 = vld [vmem:[%s3 + $0x18] sm:$0xf]
    %v368 = vld [vmem:[%s3 + $0x1c] sm:$0xf]
    %v369 = vld [vmem:[%s3 + $0x20] sm:$0xf]
    %v370 = vld [vmem:[%s3 + $0x24] sm:$0xf]
    %v371 = vld [vmem:[%s3 + $0x28] sm:$0xf]
    %v372 = vld [vmem:[%s3 + $0x2c] sm:$0xf]
    %v373 = vld [vmem:[%s3 + $0x30] sm:$0xf]
    %v374 = vld [vmem:[%s3 + $0x34] sm:$0xf]
    %v375 = vld [vmem:[%s3 + $0x38] sm:$0xf]
    %v376 = vld [vmem:[%s3 + $0x3c] sm:$0xf]
    %v377 = vunpack.c.l.bf16 %v361
    %v378 = vunpack.c.l.bf16 %v362
    %v379 = vunpack.c.l.bf16 %v363
    %v380 = vunpack.c.l.bf16 %v364
    %v381 = vunpack.c.l.bf16 %v365
    %v382 = vunpack.c.l.bf16 %v366
    %v383 = vunpack.c.l.bf16 %v367
    %v384 = vunpack.c.l.bf16 %v368
    %v385 = vunpack.c.l.bf16 %v369
    %v386 = vunpack.c.l.bf16 %v370
    %v387 = vunpack.c.l.bf16 %v371
    %v388 = vunpack.c.l.bf16 %v372
    %v389 = vunpack.c.l.bf16 %v373
    %v390 = vunpack.c.l.bf16 %v374
    %v391 = vunpack.c.l.bf16 %v375
    %v392 = vunpack.c.l.bf16 %v376
    %v393 = vstv %s360
    %v394 = vmul.f32 %v393, %v377
    %v395 = vmul.f32 %v393, %v378
    %v396 = vmul.f32 %v393, %v379
    %v397 = vmul.f32 %v393, %v380
    %v398 = vmul.f32 %v393, %v381
    %v399 = vmul.f32 %v393, %v382
    %v400 = vmul.f32 %v393, %v383
    %v401 = vmul.f32 %v393, %v384
    %v402 = vmul.f32 %v393, %v385
    %v403 = vmul.f32 %v393, %v386
    %v404 = vmul.f32 %v393, %v387
    %v405 = vmul.f32 %v393, %v388
    %v406 = vmul.f32 %v393, %v389
    %v407 = vmul.f32 %v393, %v390
    %v408 = vmul.f32 %v393, %v391
    %v409 = vmul.f32 %v393, %v392
    %v410 = vadd.f32 %v344, %v394
    %v411 = vadd.f32 %v345, %v395
    %v412 = vadd.f32 %v346, %v396
    %v413 = vadd.f32 %v347, %v397
    %v414 = vadd.f32 %v348, %v398
    %v415 = vadd.f32 %v349, %v399
    %v416 = vadd.f32 %v350, %v400
    %v417 = vadd.f32 %v351, %v401
    %v418 = vadd.f32 %v352, %v402
    %v419 = vadd.f32 %v353, %v403
    %v420 = vadd.f32 %v354, %v404
    %v421 = vadd.f32 %v355, %v405
    %v422 = vadd.f32 %v356, %v406
    %v423 = vadd.f32 %v357, %v407
    %v424 = vadd.f32 %v358, %v408
    %v425 = vadd.f32 %v359, %v409
    %v426 = vpack.c.bf16 %v411, %v410
    %v427 = vpack.c.bf16 %v413, %v412
    %v428 = vpack.c.bf16 %v415, %v414
    %v429 = vpack.c.bf16 %v417, %v416
    %v430 = vpack.c.bf16 %v419, %v418
    %v431 = vpack.c.bf16 %v421, %v420
    %v432 = vpack.c.bf16 %v423, %v422
    %v433 = vpack.c.bf16 %v425, %v424
    %v434 = vld [vmem:[%s4] sm:$0xf]
    %v435 = vld [vmem:[%s4 + $0x4] sm:$0xf]
    %v436 = vld [vmem:[%s4 + $0x8] sm:$0xf]
    %v437 = vld [vmem:[%s4 + $0xc] sm:$0xf]
    %v438 = vld [vmem:[%s4 + $0x10] sm:$0xf]
    %v439 = vld [vmem:[%s4 + $0x14] sm:$0xf]
    %v440 = vld [vmem:[%s4 + $0x18] sm:$0xf]
    %v441 = vld [vmem:[%s4 + $0x1c] sm:$0xf]
    %v442 = vld [vmem:[%s4 + $0x20] sm:$0xf]
    %v443 = vld [vmem:[%s4 + $0x24] sm:$0xf]
    %v444 = vld [vmem:[%s4 + $0x28] sm:$0xf]
    %v445 = vld [vmem:[%s4 + $0x2c] sm:$0xf]
    %v446 = vld [vmem:[%s4 + $0x30] sm:$0xf]
    %v447 = vld [vmem:[%s4 + $0x34] sm:$0xf]
    %v448 = vld [vmem:[%s4 + $0x38] sm:$0xf]
    %v449 = vld [vmem:[%s4 + $0x3c] sm:$0xf]
    %v450 = vld [vmem:[%s5] sm:$0x1]
    %v452 = vlaneseq
    %v453 = vshrl.u32 %v452, 7
    %v454 = vsub.s32 0, %v453
    %v455 = vrot.slane %v450, %v454
    %v473 = vunpack.c.l.b16 %v434
    %v474 = vunpack.c.l.b16 %v435
    %v475 = vunpack.c.l.b16 %v436
    %v476 = vunpack.c.l.b16 %v437
    %v477 = vunpack.c.l.b16 %v438
    %v478 = vunpack.c.l.b16 %v439
    %v479 = vunpack.c.l.b16 %v440
    %v480 = vunpack.c.l.b16 %v441
    %v481 = vunpack.c.l.b16 %v442
    %v482 = vunpack.c.l.b16 %v443
    %v483 = vunpack.c.l.b16 %v444
    %v484 = vunpack.c.l.b16 %v445
    %v485 = vunpack.c.l.b16 %v446
    %v486 = vunpack.c.l.b16 %v447
    %v487 = vunpack.c.l.b16 %v448
    %v488 = vunpack.c.l.b16 %v449
    %v489 = vpack.c.b16 %v474, %v473
    %v490 = vpack.c.b16 %v476, %v475
    %v491 = vpack.c.b16 %v478, %v477
    %v492 = vpack.c.b16 %v480, %v479
    %v493 = vpack.c.b16 %v482, %v481
    %v494 = vpack.c.b16 %v484, %v483
    %v495 = vpack.c.b16 %v486, %v485
    %v496 = vpack.c.b16 %v488, %v487
    %505 = vmatprep.subr.bf16.mxu0 0
    %506 = vmatpush1.bf16.msra.mxu0 %v489
    %507 = vmatprep.subr.bf16.mxu0 0
    %508 = vmatpush1.bf16.msra.mxu0 %v490
    %509 = vmatprep.subr.bf16.mxu0 0
    %510 = vmatpush1.bf16.msra.mxu0 %v491
    %511 = vmatprep.subr.bf16.mxu0 0
    %512 = vmatpush1.bf16.msra.mxu0 %v492
    %513 = vmatprep.subr.bf16.mxu0 0
    %514 = vmatpush1.bf16.msra.mxu0 %v493
    %515 = vmatprep.subr.bf16.mxu0 0
    %516 = vmatpush1.bf16.msra.mxu0 %v494
    %517 = vmatprep.subr.bf16.mxu0 0
    %518 = vmatpush1.bf16.msra.mxu0 %v495
    %519 = vmatprep.subr.bf16.mxu0 0
    %520 = vmatpush1.bf16.msra.mxu0 %v496
    %521 = vmatprep.subr.bf16.mxu0 0
    %522 = vmatpush1.bf16.msra.mxu0 0
    %523 = vmatprep.subr.bf16.mxu0 0
    %524 = vmatpush1.bf16.msra.mxu0 0
    %525 = vmatprep.subr.bf16.mxu0 0
    %526 = vmatpush1.bf16.msra.mxu0 0
    %527 = vmatprep.subr.bf16.mxu0 0
    %528 = vmatpush1.bf16.msra.mxu0 0
    %529 = vmatprep.subr.bf16.mxu0 0
    %530 = vmatpush1.bf16.msra.mxu0 0
    %531 = vmatprep.subr.bf16.mxu0 0
    %532 = vmatpush1.bf16.msra.mxu0 0
    %533 = vmatprep.subr.bf16.mxu0 0
    %534 = vmatpush1.bf16.msra.mxu0 0
    %535 = vmatprep.subr.bf16.mxu0 0
    %536 = vmatpush1.bf16.msra.mxu0 0
    %537 = vmatprep.mubr.bf16.mxu0 0
    %538 = vmatmul.mubr.bf16.gmra.mrb[0].mxu0 %v426
    %v539 = vpop.f32.mrb[0].mxu0
    %v540 = vadd.f32 %v455, %v539
    %v541 = vpop.f32.mrb[0].mxu0
    %v542 = vpop.f32.mrb[0].mxu0
    %v543 = vadd.f32 %v455, %v542
    %v544 = vpop.f32.mrb[0].mxu0
    %545 = vmatprep.mubr.bf16.mxu0 0
    %546 = vmatmul.mubr.bf16.gmra.mrb[0].mxu0 %v427
    %v547 = vpop.f32.mrb[0].mxu0
    %v548 = vadd.f32 %v455, %v547
    %v549 = vpop.f32.mrb[0].mxu0
    %v550 = vpop.f32.mrb[0].mxu0
    %v551 = vadd.f32 %v455, %v550
    %v552 = vpop.f32.mrb[0].mxu0
    %553 = vmatprep.mubr.bf16.mxu0 0
    %554 = vmatmul.mubr.bf16.gmra.mrb[0].mxu0 %v428
    %v555 = vpop.f32.mrb[0].mxu0
    %v556 = vadd.f32 %v455, %v555
    %v557 = vpop.f32.mrb[0].mxu0
    %v558 = vpop.f32.mrb[0].mxu0
    %v559 = vadd.f32 %v455, %v558
    %v560 = vpop.f32.mrb[0].mxu0
    %561 = vmatprep.mubr.bf16.mxu0 0
    %562 = vmatmul.mubr.bf16.gmra.mrb[0].mxu0 %v429
    %v563 = vpop.f32.mrb[0].mxu0
    %v564 = vadd.f32 %v455, %v563
    %v565 = vpop.f32.mrb[0].mxu0
    %v566 = vpop.f32.mrb[0].mxu0
    %v567 = vadd.f32 %v455, %v566
    %v568 = vpop.f32.mrb[0].mxu0
    %569 = vmatprep.mubr.bf16.mxu0 0
    %570 = vmatmul.mubr.bf16.gmra.mrb[0].mxu0 %v430
    %v571 = vpop.f32.mrb[0].mxu0
    %v572 = vadd.f32 %v455, %v571
    %v573 = vpop.f32.mrb[0].mxu0
    %v574 = vpop.f32.mrb[0].mxu0
    %v575 = vadd.f32 %v455, %v574
    %v576 = vpop.f32.mrb[0].mxu0
    %577 = vmatprep.mubr.bf16.mxu0 0
    %578 = vmatmul.mubr.bf16.gmra.mrb[0].mxu0 %v431
    %v579 = vpop.f32.mrb[0].mxu0
    %v580 = vadd.f32 %v455, %v579
    %v581 = vpop.f32.mrb[0].mxu0
    %v582 = vpop.f32.mrb[0].mxu0
    %v583 = vadd.f32 %v455, %v582
    %v584 = vpop.f32.mrb[0].mxu0
    %585 = vmatprep.mubr.bf16.mxu0 0
    %586 = vmatmul.mubr.bf16.gmra.mrb[0].mxu0 %v432
    %v587 = vpop.f32.mrb[0].mxu0
    %v588 = vadd.f32 %v455, %v587
    %v589 = vpop.f32.mrb[0].mxu0
    %v590 = vpop.f32.mrb[0].mxu0
    %v591 = vadd.f32 %v455, %v590
    %v592 = vpop.f32.mrb[0].mxu0
    %593 = vmatprep.mubr.bf16.mxu0 0
    %594 = vmatmul.mubr.bf16.gmra.mrb[0].mxu0 %v433
    %v595 = vpop.f32.mrb[0].mxu0
    %v596 = vadd.f32 %v455, %v595
    %v597 = vpop.f32.mrb[0].mxu0
    %v598 = vpop.f32.mrb[0].mxu0
    %v599 = vadd.f32 %v455, %v598
    %v600 = vpop.f32.mrb[0].mxu0
    %601 = vdwg.mxu0
    %v602 = vmax.f32 %v540, 0.0
    %v603 = vmax.f32 %v543, 0.0
    %v604 = vmax.f32 %v548, 0.0
    %v605 = vmax.f32 %v551, 0.0
    %v606 = vmax.f32 %v556, 0.0
    %v607 = vmax.f32 %v559, 0.0
    %v608 = vmax.f32 %v564, 0.0
    %v609 = vmax.f32 %v567, 0.0
    %v610 = vmax.f32 %v572, 0.0
    %v611 = vmax.f32 %v575, 0.0
    %v612 = vmax.f32 %v580, 0.0
    %v613 = vmax.f32 %v583, 0.0
    %v614 = vmax.f32 %v588, 0.0
    %v615 = vmax.f32 %v591, 0.0
    %v616 = vmax.f32 %v596, 0.0
    %v617 = vmax.f32 %v599, 0.0
    %v618 = vpack.c.bf16 %v603, %v602
    %v619 = vpack.c.bf16 %v605, %v604
    %v620 = vpack.c.bf16 %v607, %v606
    %v621 = vpack.c.bf16 %v609, %v608
    %v622 = vpack.c.bf16 %v611, %v610
    %v623 = vpack.c.bf16 %v613, %v612
    %v624 = vpack.c.bf16 %v615, %v614
    %v625 = vpack.c.bf16 %v617, %v616
    %v626 = vld [vmem:[%s6] sm:$0xf]
    %v627 = vld [vmem:[%s6 + $0x4] sm:$0xf]
    %v628 = vld [vmem:[%s6 + $0x8] sm:$0xf]
    %v629 = vld [vmem:[%s6 + $0xc] sm:$0xf]
    %v630 = vld [vmem:[%s6 + $0x10] sm:$0xf]
    %v631 = vld [vmem:[%s6 + $0x14] sm:$0xf]
    %v632 = vld [vmem:[%s6 + $0x18] sm:$0xf]
    %v633 = vld [vmem:[%s6 + $0x1c] sm:$0xf]
    %v634 = vld [vmem:[%s6 + $0x20] sm:$0xf]
    %v635 = vld [vmem:[%s6 + $0x24] sm:$0xf]
    %v636 = vld [vmem:[%s6 + $0x28] sm:$0xf]
    %v637 = vld [vmem:[%s6 + $0x2c] sm:$0xf]
    %v638 = vld [vmem:[%s6 + $0x30] sm:$0xf]
    %v639 = vld [vmem:[%s6 + $0x34] sm:$0xf]
    %v640 = vld [vmem:[%s6 + $0x38] sm:$0xf]
    %v641 = vld [vmem:[%s6 + $0x3c] sm:$0xf]
    %v642 = vld [vmem:[%s7] sm:$0x1]
    %v644 = vlaneseq
    %v645 = vshrl.u32 %v644, 7
    %v646 = vsub.s32 0, %v645
    %v647 = vrot.slane %v642, %v646
    %v665 = vunpack.c.l.b16 %v626
    %v666 = vunpack.c.l.b16 %v627
    %v667 = vunpack.c.l.b16 %v628
    %v668 = vunpack.c.l.b16 %v629
    %v669 = vunpack.c.l.b16 %v630
    %v670 = vunpack.c.l.b16 %v631
    %v671 = vunpack.c.l.b16 %v632
    %v672 = vunpack.c.l.b16 %v633
    %v673 = vunpack.c.l.b16 %v634
    %v674 = vunpack.c.l.b16 %v635
    %v675 = vunpack.c.l.b16 %v636
    %v676 = vunpack.c.l.b16 %v637
    %v677 = vunpack.c.l.b16 %v638
    %v678 = vunpack.c.l.b16 %v639
    %v679 = vunpack.c.l.b16 %v640
    %v680 = vunpack.c.l.b16 %v641
    %v681 = vpack.c.b16 %v666, %v665
    %v682 = vpack.c.b16 %v668, %v667
    %v683 = vpack.c.b16 %v670, %v669
    %v684 = vpack.c.b16 %v672, %v671
    %v685 = vpack.c.b16 %v674, %v673
    %v686 = vpack.c.b16 %v676, %v675
    %v687 = vpack.c.b16 %v678, %v677
    %v688 = vpack.c.b16 %v680, %v679
    %697 = vmatprep.subr.bf16.mxu0 0
    %698 = vmatpush1.bf16.msra.mxu0 %v681
    %699 = vmatprep.subr.bf16.mxu0 0
    %700 = vmatpush1.bf16.msra.mxu0 %v682
    %701 = vmatprep.subr.bf16.mxu0 0
    %702 = vmatpush1.bf16.msra.mxu0 %v683
    %703 = vmatprep.subr.bf16.mxu0 0
    %704 = vmatpush1.bf16.msra.mxu0 %v684
    %705 = vmatprep.subr.bf16.mxu0 0
    %706 = vmatpush1.bf16.msra.mxu0 %v685
    %707 = vmatprep.subr.bf16.mxu0 0
    %708 = vmatpush1.bf16.msra.mxu0 %v686
    %709 = vmatprep.subr.bf16.mxu0 0
    %710 = vmatpush1.bf16.msra.mxu0 %v687
    %711 = vmatprep.subr.bf16.mxu0 0
    %712 = vmatpush1.bf16.msra.mxu0 %v688
    %713 = vmatprep.subr.bf16.mxu0 0
    %714 = vmatpush1.bf16.msra.mxu0 0
    %715 = vmatprep.subr.bf16.mxu0 0
    %716 = vmatpush1.bf16.msra.mxu0 0
    %717 = vmatprep.subr.bf16.mxu0 0
    %718 = vmatpush1.bf16.msra.mxu0 0
    %719 = vmatprep.subr.bf16.mxu0 0
    %720 = vmatpush1.bf16.msra.mxu0 0
    %721 = vmatprep.subr.bf16.mxu0 0
    %722 = vmatpush1.bf16.msra.mxu0 0
    %723 = vmatprep.subr.bf16.mxu0 0
    %724 = vmatpush1.bf16.msra.mxu0 0
    %725 = vmatprep.subr.bf16.mxu0 0
    %726 = vmatpush1.bf16.msra.mxu0 0
    %727 = vmatprep.subr.bf16.mxu0 0
    %728 = vmatpush1.bf16.msra.mxu0 0
    %729 = vmatprep.mubr.bf16.mxu0 0
    %730 = vmatmul.mubr.bf16.gmra.mrb[0].mxu0 %v618
    %v731 = vpop.f32.mrb[0].mxu0
    %v732 = vadd.f32 %v647, %v731
    %v733 = vpop.f32.mrb[0].mxu0
    %v734 = vpop.f32.mrb[0].mxu0
    %v735 = vadd.f32 %v647, %v734
    %v736 = vpop.f32.mrb[0].mxu0
    %737 = vmatprep.mubr.bf16.mxu0 0
    %738 = vmatmul.mubr.bf16.gmra.mrb[0].mxu0 %v619
    %v739 = vpop.f32.mrb[0].mxu0
    %v740 = vadd.f32 %v647, %v739
    %v741 = vpop.f32.mrb[0].mxu0
    %v742 = vpop.f32.mrb[0].mxu0
    %v743 = vadd.f32 %v647, %v742
    %v744 = vpop.f32.mrb[0].mxu0
    %745 = vmatprep.mubr.bf16.mxu0 0
    %746 = vmatmul.mubr.bf16.gmra.mrb[0].mxu0 %v620
    %v747 = vpop.f32.mrb[0].mxu0
    %v748 = vadd.f32 %v647, %v747
    %v749 = vpop.f32.mrb[0].mxu0
    %v750 = vpop.f32.mrb[0].mxu0
    %v751 = vadd.f32 %v647, %v750
    %v752 = vpop.f32.mrb[0].mxu0
    %753 = vmatprep.mubr.bf16.mxu0 0
    %754 = vmatmul.mubr.bf16.gmra.mrb[0].mxu0 %v621
    %v755 = vpop.f32.mrb[0].mxu0
    %v756 = vadd.f32 %v647, %v755
    %v757 = vpop.f32.mrb[0].mxu0
    %v758 = vpop.f32.mrb[0].mxu0
    %v759 = vadd.f32 %v647, %v758
    %v760 = vpop.f32.mrb[0].mxu0
    %761 = vmatprep.mubr.bf16.mxu0 0
    %762 = vmatmul.mubr.bf16.gmra.mrb[0].mxu0 %v622
    %v763 = vpop.f32.mrb[0].mxu0
    %v764 = vadd.f32 %v647, %v763
    %v765 = vpop.f32.mrb[0].mxu0
    %v766 = vpop.f32.mrb[0].mxu0
    %v767 = vadd.f32 %v647, %v766
    %v768 = vpop.f32.mrb[0].mxu0
    %769 = vmatprep.mubr.bf16.mxu0 0
    %770 = vmatmul.mubr.bf16.gmra.mrb[0].mxu0 %v623
    %v771 = vpop.f32.mrb[0].mxu0
    %v772 = vadd.f32 %v647, %v771
    %v773 = vpop.f32.mrb[0].mxu0
    %v774 = vpop.f32.mrb[0].mxu0
    %v775 = vadd.f32 %v647, %v774
    %v776 = vpop.f32.mrb[0].mxu0
    %777 = vmatprep.mubr.bf16.mxu0 0
    %778 = vmatmul.mubr.bf16.gmra.mrb[0].mxu0 %v624
    %v779 = vpop.f32.mrb[0].mxu0
    %v780 = vadd.f32 %v647, %v779
    %v781 = vpop.f32.mrb[0].mxu0
    %v782 = vpop.f32.mrb[0].mxu0
    %v783 = vadd.f32 %v647, %v782
    %v784 = vpop.f32.mrb[0].mxu0
    %785 = vmatprep.mubr.bf16.mxu0 0
    %786 = vmatmul.mubr.bf16.gmra.mrb[0].mxu0 %v625
    %v787 = vpop.f32.mrb[0].mxu0
    %v788 = vadd.f32 %v647, %v787
    %v789 = vpop.f32.mrb[0].mxu0
    %v790 = vpop.f32.mrb[0].mxu0
    %v791 = vadd.f32 %v647, %v790
    %v792 = vpop.f32.mrb[0].mxu0
    %793 = vdwg.mxu0
    %v794 = vpack.c.bf16 %v735, %v732
    %v795 = vpack.c.bf16 %v743, %v740
    %v796 = vpack.c.bf16 %v751, %v748
    %v797 = vpack.c.bf16 %v759, %v756
    %v798 = vpack.c.bf16 %v767, %v764
    %v799 = vpack.c.bf16 %v775, %v772
    %v800 = vpack.c.bf16 %v783, %v780
    %v801 = vpack.c.bf16 %v791, %v788
    %v810 = vunpack.c.l.b16 %v794
    %v811 = vunpack.c.h.b16 %v794
    %v812 = vunpack.c.l.b16 %v795
    %v813 = vunpack.c.h.b16 %v795
    %v814 = vunpack.c.l.b16 %v796
    %v815 = vunpack.c.h.b16 %v796
    %v816 = vunpack.c.l.b16 %v797
    %v817 = vunpack.c.h.b16 %v797
    %v818 = vunpack.c.l.b16 %v798
    %v819 = vunpack.c.h.b16 %v798
    %v820 = vunpack.c.l.b16 %v799
    %v821 = vunpack.c.h.b16 %v799
    %v822 = vunpack.c.l.b16 %v800
    %v823 = vunpack.c.h.b16 %v800
    %v824 = vunpack.c.l.b16 %v801
    %v825 = vunpack.c.h.b16 %v801
    %v826 = vpack.c.b16 %v810, %v810
    %v827 = vpack.c.b16 %v811, %v811
    %v828 = vpack.c.b16 %v812, %v812
    %v829 = vpack.c.b16 %v813, %v813
    %v830 = vpack.c.b16 %v814, %v814
    %v831 = vpack.c.b16 %v815, %v815
    %v832 = vpack.c.b16 %v816, %v816
    %v833 = vpack.c.b16 %v817, %v817
    %v834 = vpack.c.b16 %v818, %v818
    %v835 = vpack.c.b16 %v819, %v819
    %v836 = vpack.c.b16 %v820, %v820
    %v837 = vpack.c.b16 %v821, %v821
    %v838 = vpack.c.b16 %v822, %v822
    %v839 = vpack.c.b16 %v823, %v823
    %v840 = vpack.c.b16 %v824, %v824
    %v841 = vpack.c.b16 %v825, %v825
    %858 = vst [vmem:[%s8] sm:$0xf] %v826
    %859 = vst [vmem:[%s8 + $0x4] sm:$0xf] %v827
    %860 = vst [vmem:[%s8 + $0x8] sm:$0xf] %v828
    %861 = vst [vmem:[%s8 + $0xc] sm:$0xf] %v829
    %862 = vst [vmem:[%s8 + $0x10] sm:$0xf] %v830
    %863 = vst [vmem:[%s8 + $0x14] sm:$0xf] %v831
    %864 = vst [vmem:[%s8 + $0x18] sm:$0xf] %v832
    %865 = vst [vmem:[%s8 + $0x1c] sm:$0xf] %v833
    %866 = vst [vmem:[%s8 + $0x20] sm:$0xf] %v834
    %867 = vst [vmem:[%s8 + $0x24] sm:$0xf] %v835
    %868 = vst [vmem:[%s8 + $0x28] sm:$0xf] %v836
    %869 = vst [vmem:[%s8 + $0x2c] sm:$0xf] %v837
    %870 = vst [vmem:[%s8 + $0x30] sm:$0xf] %v838
    %871 = vst [vmem:[%s8 + $0x34] sm:$0xf] %v839
    %872 = vst [vmem:[%s8 + $0x38] sm:$0xf] %v840
    %873 = vst [vmem:[%s8 + $0x3c] sm:$0xf] %v841
  $region41: #{gin_forward.3} parent=0 // pred_fallthru
    _
  // Predicated region
  $region42: #{gin_forward.3} parent=0 // pred_check
    _
  $region43: #{gin_forward.3} parent=0 // pred_check_branch
    %875 = sbr.rel (0) target = $region45
  $region44: #{gin_forward.3} parent=0 // pred_region
    _
  $region45: #{gin_forward.3} parent=0 // pred_fallthru
    _
  // Predicated region
  $region46: #{gin_forward.3} parent=0 // pred_check
    _
  $region47: #{gin_forward.3} parent=0 // pred_check_branch
    %877 = sbr.rel (0) target = $region49
  $region48: #{gin_forward.3} parent=0 // pred_region
    _
  $region49: #{gin_forward.3} parent=0 // pred_fallthru
    _

</llo_original>
